<compile_context>
chip_gen: v6e
topology: v6e:2x2x1
jax: 0.10.0
libtpu: 0.0.40
codegen_flags: <defaults>
</compile_context>

<pallas_src>
from functools import partial

import numpy as np
import jax
import jax.numpy as jnp
from jax.experimental import pallas as pl
from jax.experimental.pallas import tpu as pltpu


# --------------------------------- the kernel ---------------------------------

def _up_doubleconv_kernel(x1f_ref, x2s_ref, uh_ref, uwz_ref,
                          m1_ref, b1_ref, m2_ref, b2_ref,
                          out_ref, pad1_ref, pad2_ref, *, row_off):
    f32 = jnp.float32
    H = x2s_ref.shape[1]          # skip-connection height == output height
    H2 = uh_ref.shape[0]          # upsampled-x1 height
    c2w = x2s_ref.shape[2]        # C2*(W+2): lane offset of the x1 channel block

    # ---- build conv1 padded input: [x2, F.pad(upsample(x1))] as (H+2, Cin*(W+2))
    pad1_ref[...] = jnp.zeros(pad1_ref.shape, f32)     # small; needed for general F.pad
    pad1_ref[1:1 + H, 0:c2w] = x2s_ref[0]              # skip features (W-halo pre-zeroed)

    # bilinear upsample (align_corners=True) as two MXU matmuls; uwz also scatters
    # each channel into its (W+2)-strided lane block at the F.pad / conv-pad offset.
    t = jnp.dot(uh_ref[...], x1f_ref[0], preferred_element_type=f32)
    x1u = jnp.dot(t, uwz_ref[...], preferred_element_type=f32)
    pad1_ref[row_off:row_off + H2, c2w:] = x1u

    # ---- conv1 (3x3, BN scale folded into m1) -> bias -> ReLU,
    #      emitted directly in the (W+2)-strided layout of the conv2 pad buffer.
    acc = jnp.dot(pad1_ref[0:H, :], m1_ref[0], preferred_element_type=f32)
    acc = acc + jnp.dot(pad1_ref[1:1 + H, :], m1_ref[1], preferred_element_type=f32)
    acc = acc + jnp.dot(pad1_ref[2:2 + H, :], m1_ref[2], preferred_element_type=f32)
    h1 = jnp.maximum(acc + b1_ref[...], 0.0)

    zrow = jnp.zeros((1, pad2_ref.shape[1]), f32)
    pad2_ref[0:1, :] = zrow                            # top halo row
    pad2_ref[H + 1:H + 2, :] = zrow                    # bottom halo row
    pad2_ref[1:1 + H, :] = h1                          # interior fully overwritten;
                                                       # W-halo lanes are exactly zero
                                                       # because m1/b1 never target them.

    # ---- conv2 (3x3, BN scale folded into m2) -> bias -> ReLU -> dense (H, Cout*W)
    acc = jnp.dot(pad2_ref[0:H, :], m2_ref[0], preferred_element_type=f32)
    acc = acc + jnp.dot(pad2_ref[1:1 + H, :], m2_ref[1], preferred_element_type=f32)
    acc = acc + jnp.dot(pad2_ref[2:2 + H, :], m2_ref[2], preferred_element_type=f32)
    out_ref[0] = jnp.maximum(acc + b2_ref[...], 0.0).astype(out_ref.dtype)


# --------------------------- host-side matrix builders -------------------------

def _interp_matrix_ac(n_out, n_in):
    """1-D interpolation matrix of nn.Upsample(mode='bilinear', align_corners=True)."""
    m = np.zeros((n_out, n_in), np.float32)
    for i in range(n_out):
        src = i * (n_in - 1) / (n_out - 1) if n_out > 1 else 0.0
        i0 = min(int(np.floor(src)), n_in - 1)
        i1 = min(i0 + 1, n_in - 1)
        f = src - i0
        m[i, i0] += 1.0 - f
        m[i, i1] += f
    return m


def _upsample_w_matrix(uw, c1, w_out, px):
    """Column-interp matrix that also scatters each channel into its (w_out+2)-strided
    lane block at column offset 1 + px (conv pad + F.pad left)."""
    w2, w1 = uw.shape
    m = np.zeros((c1 * w1, c1 * (w_out + 2)), np.float32)
    for c in range(c1):
        for j in range(w2):
            for i in range(w1):
                m[c * w1 + i, c * (w_out + 2) + 1 + px + j] = uw[j, i]
    return m


def _conv_matrices(w_hwio, bn_scale, bn_bias, w_spatial, strided_out):
    """3x3 conv + folded BN as 3 lane-matmul matrices (one per kernel row ky).

    Input lanes : ci * (W+2) + u   (u = padded column index).
    Output lanes: co * (W+2) + 1 + w  if strided_out (feeds the next pad buffer),
                  co * W + w          otherwise      (dense final output).
    """
    kh, kw, ci_n, co_n = w_hwio.shape
    wf = np.asarray(w_hwio, np.float32) * np.asarray(bn_scale, np.float32)[None, None, None, :]
    bias = np.asarray(bn_bias, np.float32)
    stride, off = (w_spatial + 2, 1) if strided_out else (w_spatial, 0)
    m = np.zeros((kh, ci_n * (w_spatial + 2), co_n * stride), np.float32)
    for ky in range(kh):
        for kx in range(kw):
            for ci in range(ci_n):
                for co in range(co_n):
                    v = wf[ky, kx, ci, co]
                    for w in range(w_spatial):
                        m[ky, ci * (w_spatial + 2) + w + kx, co * stride + off + w] = v
    b = np.zeros((1, co_n * stride), np.float32)
    for co in range(co_n):
        b[0, co * stride + off: co * stride + off + w_spatial] = bias[co]
    return m, b


# ------------------------------- host-side wrapper ------------------------------

def up_forward(x1_nchw, x2_nchw, params):
    """Forward of Up(bilinear=True): upsample x1, pad, concat with x2, DoubleConv."""
    n, c1, h1, w1 = x1_nchw.shape
    n2, c2, h, w = x2_nchw.shape
    assert n == n2
    h_up, w_up = 2 * h1, 2 * w1
    diff_y, diff_x = h - h_up, w - w_up
    assert diff_y >= 0 and diff_x >= 0, "x2 must be at least as large as upsampled x1"
    py, px = diff_y // 2, diff_x // 2
    c_in = c1 + c2
    c_mid = params["w1"].shape[3]
    c_out = params["w2"].shape[3]
    assert params["w1"].shape[2] == c_in

    # --- fold BN (inference mode) into the conv matrices host-side ---
    def bn_fold(bn):
        s = np.asarray(bn["gamma"]) / np.sqrt(np.asarray(bn["var"]) + 1e-5)
        b = np.asarray(bn["beta"]) - np.asarray(bn["mean"]) * s
        return s, b

    s1, bb1 = bn_fold(params["bn1"])
    s2, bb2 = bn_fold(params["bn2"])
    m1, b1 = _conv_matrices(np.asarray(params["w1"]), s1, bb1, w, strided_out=True)
    m2, b2 = _conv_matrices(np.asarray(params["w2"]), s2, bb2, w, strided_out=False)
    uh = _interp_matrix_ac(h_up, h1)
    uwz = _upsample_w_matrix(_interp_matrix_ac(w_up, w1), c1, w, px)
    uh, uwz, m1, b1, m2, b2 = map(jnp.asarray, (uh, uwz, m1, b1, m2, b2))

    # --- lane-dense layout plumbing (NCHW -> (N, H, C*W) slabs) ---
    x1f = jnp.transpose(x1_nchw, (0, 2, 1, 3)).reshape(n, h1, c1 * w1).astype(jnp.float32)
    x2t = jnp.transpose(x2_nchw, (0, 2, 1, 3)).astype(jnp.float32)
    x2s = jnp.pad(x2t, ((0, 0), (0, 0), (0, 0), (1, 1))).reshape(n, h, c2 * (w + 2))

    kernel = partial(_up_doubleconv_kernel, row_off=1 + py)

    def full(a):
        return pl.BlockSpec(tuple(a.shape), lambda i, nd=a.ndim: (0,) * nd)

    y = pl.pallas_call(
        kernel,
        out_shape=jax.ShapeDtypeStruct((n, h, c_out * w), jnp.float32),
        grid=(n,),
        in_specs=[
            pl.BlockSpec((1, h1, c1 * w1), lambda i: (i, 0, 0)),
            pl.BlockSpec((1, h, c2 * (w + 2)), lambda i: (i, 0, 0)),
            full(uh), full(uwz), full(m1), full(b1), full(m2), full(b2),
        ],
        out_specs=pl.BlockSpec((1, h, c_out * w), lambda i: (i, 0, 0)),
        scratch_shapes=[
            pltpu.VMEM((h + 2, c_in * (w + 2)), jnp.float32),   # conv1 padded input
            pltpu.VMEM((h + 2, c_mid * (w + 2)), jnp.float32),  # conv2 padded input
        ],
        compiler_params=pltpu.CompilerParams(dimension_semantics=("parallel",)),
    )(x1f, x2s, uh, uwz, m1, b1, m2, b2)

    return jnp.transpose(y.reshape(n, h, c_out, w), (0, 2, 1, 3))


# ------------------------------- parameter init --------------------------------

def init_params(key, in_channels, out_channels):
    mid_channels = in_channels // 2            # DoubleConv(in, out, in // 2) for bilinear Up
    ks = jax.random.split(key, 4)

    def conv_w(k, ci, co):
        return jax.random.normal(k, (3, 3, ci, co), jnp.float32) / np.sqrt(9.0 * ci)

    def bn(k, c):
        k1, k2, k3, k4 = jax.random.split(k, 4)
        return dict(gamma=jax.random.uniform(k1, (c,), jnp.float32, 0.5, 1.5),
                    beta=0.1 * jax.random.normal(k2, (c,), jnp.float32),
                    mean=0.1 * jax.random.normal(k3, (c,), jnp.float32),
                    var=jax.random.uniform(k4, (c,), jnp.float32, 0.5, 1.5))

    return dict(w1=conv_w(ks[0], in_channels, mid_channels), bn1=bn(ks[1], mid_channels),
                w2=conv_w(ks[2], mid_channels, out_channels), bn2=bn(ks[3], out_channels))


# --------------------------- pure-JAX reference (check) -------------------------

def _bilinear_upsample_align_corners(x):
    n, c, h, w = x.shape
    ho, wo = 2 * h, 2 * w

    def coords(n_out, n_in):
        if n_in == 1:
            z = jnp.zeros((n_out,), jnp.int32)
            return z, z, jnp.zeros((n_out,), jnp.float32)
        src = jnp.arange(n_out, dtype=jnp.float32) * (n_in - 1) / (n_out - 1)
        i0 = jnp.clip(jnp.floor(src).astype(jnp.int32), 0, n_in - 1)
        i1 = jnp.clip(i0 + 1, 0, n_in - 1)
        return i0, i1, src - i0.astype(jnp.float32)

    y0, y1, fy = coords(ho, h)
    x0, x1, fx = coords(wo, w)
    r = (1.0 - fy)[None, None, :, None] * x[:, :, y0, :] + fy[None, None, :, None] * x[:, :, y1, :]
    return (1.0 - fx)[None, None, None, :] * r[:, :, :, x0] + fx[None, None, None, :] * r[:, :, :, x1]


def reference_forward(x1, x2, params):
    _, _, h, w = x2.shape
    x1u = _bilinear_upsample_align_corners(x1.astype(jnp.float32))
    diff_y = h - x1u.shape[2]
    diff_x = w - x1u.shape[3]
    x1p = jnp.pad(x1u, ((0, 0), (0, 0),
                        (diff_y // 2, diff_y - diff_y // 2),
                        (diff_x // 2, diff_x - diff_x // 2)))
    xcat = jnp.concatenate([x2.astype(jnp.float32), x1p], axis=1)

    def conv_bn_relu(v, w_hwio, bn):
        y = jax.lax.conv_general_dilated(
            v, w_hwio, (1, 1), ((1, 1), (1, 1)),
            dimension_numbers=("NCHW", "HWIO", "NCHW"),
            precision=jax.lax.Precision.HIGHEST)
        s = bn["gamma"] / jnp.sqrt(bn["var"] + 1e-5)
        b = bn["beta"] - bn["mean"] * s
        return jnp.maximum(y * s[None, :, None, None] + b[None, :, None, None], 0.0)

    hmid = conv_bn_relu(xcat, params["w1"], params["bn1"])
    return conv_bn_relu(hmid, params["w2"], params["bn2"])


# ------------------------------------- main -------------------------------------

if __name__ == "__main__":
    key = jax.random.PRNGKey(0)
    k1, k2, kp = jax.random.split(key, 3)

    # Up(in_channels=8, out_channels=8, bilinear=True):
    #   x1 = deep features (N, 4, 8, 8), x2 = skip features (N, 4, 16, 16).
    x1 = jax.random.normal(k1, (2, 4, 8, 8), jnp.float32)
    x2 = jax.random.normal(k2, (2, 4, 16, 16), jnp.float32)
    params = init_params(kp, in_channels=8, out_channels=8)

    y = jax.block_until_ready(up_forward(x1, x2, params))
    assert y.shape == (2, 8, 16, 16)
    y_ref = jax.block_until_ready(reference_forward(x1, x2, params))
    err = float(jnp.max(jnp.abs(y - y_ref)))
    if not err < 2e-3:
        raise AssertionError(f"Pallas kernel mismatch vs JAX reference: max abs err = {err}")

    # Odd spatial size exercises the F.pad path (diffY = diffX = 2).
    k3, k4 = jax.random.split(k1)
    x1b = jax.random.normal(k3, (2, 4, 7, 7), jnp.float32)
    x2b = jax.random.normal(k4, (2, 4, 16, 16), jnp.float32)
    yb = jax.block_until_ready(up_forward(x1b, x2b, params))
    yb_ref = jax.block_until_ready(reference_forward(x1b, x2b, params))
    errb = float(jnp.max(jnp.abs(yb - yb_ref)))
    if not errb < 2e-3:
        raise AssertionError(f"Pallas kernel mismatch (padded case): max abs err = {errb}")

    print("KERNEL_OK")
</pallas_src>

<mosaic_0001>
module attributes {stable_mosaic.version = 11 : i64} {
  func.func @_up_doubleconv_kernel(%arg0: i32, %arg1: memref<1x8x32xf32, #tpu.memory_space<vmem>>, %arg2: memref<1x16x72xf32, #tpu.memory_space<vmem>>, %arg3: memref<16x8xf32, #tpu.memory_space<vmem>>, %arg4: memref<32x72xf32, #tpu.memory_space<vmem>>, %arg5: memref<3x144x72xf32, #tpu.memory_space<vmem>>, %arg6: memref<1x72xf32, #tpu.memory_space<vmem>>, %arg7: memref<3x72x128xf32, #tpu.memory_space<vmem>>, %arg8: memref<1x128xf32, #tpu.memory_space<vmem>>, %arg9: memref<1x16x128xf32, #tpu.memory_space<vmem>>, %arg10: memref<18x144xf32, #tpu.memory_space<vmem>>, %arg11: memref<18x72xf32, #tpu.memory_space<vmem>>) attributes {dimension_semantics = [#tpu.dimension_semantics<parallel>], iteration_bounds = array<i64: 2>, scalar_prefetch = 0 : i64, scratch_operands = 2 : i64, tpu.core_type = #tpu.core_type<tc>, window_params = [{transform_indices = @transform_0, window_bounds = array<i64: 1, 8, 32>}, {transform_indices = @transform_1, window_bounds = array<i64: 1, 16, 72>}, {pipeline_mode = #tpu.pipeline_mode<synchronous>, transform_indices = @transform_2, window_bounds = array<i64: 16, 8>}, {pipeline_mode = #tpu.pipeline_mode<synchronous>, transform_indices = @transform_3, window_bounds = array<i64: 32, 72>}, {pipeline_mode = #tpu.pipeline_mode<synchronous>, transform_indices = @transform_4, window_bounds = array<i64: 3, 144, 72>}, {pipeline_mode = #tpu.pipeline_mode<synchronous>, transform_indices = @transform_5, window_bounds = array<i64: 1, 72>}, {pipeline_mode = #tpu.pipeline_mode<synchronous>, transform_indices = @transform_6, window_bounds = array<i64: 3, 72, 128>}, {pipeline_mode = #tpu.pipeline_mode<synchronous>, transform_indices = @transform_7, window_bounds = array<i64: 1, 128>}, {transform_indices = @transform_8, window_bounds = array<i64: 1, 16, 128>}]} {
    %cst = arith.constant 0.000000e+00 : f32
    %0 = vector.broadcast %cst : f32 to vector<18x144xf32>
    %c0 = arith.constant 0 : index
    %c0_0 = arith.constant 0 : index
    %1 = vector.load %arg10[%c0, %c0_0] : memref<18x144xf32, #tpu.memory_space<vmem>>, vector<18x144xf32>
    tpu.vector_store %arg10[%c0, %c0_0], %0 {strides = array<i32>} : memref<18x144xf32, #tpu.memory_space<vmem>>, vector<18x144xf32>,
    %c0_1 = arith.constant 0 : index
    %c0_2 = arith.constant 0 : index
    %c0_3 = arith.constant 0 : index
    %2 = vector.load %arg2[%c0_1, %c0_2, %c0_3] : memref<1x16x72xf32, #tpu.memory_space<vmem>>, vector<1x16x72xf32>
    %3 = vector.shape_cast %2 : vector<1x16x72xf32> to vector<16x72xf32>
    %c1 = arith.constant 1 : index
    %c0_4 = arith.constant 0 : index
    %4 = vector.load %arg10[%c1, %c0_4] : memref<18x144xf32, #tpu.memory_space<vmem>>, vector<16x72xf32>
    tpu.vector_store %arg10[%c1, %c0_4], %3 {strides = array<i32>} : memref<18x144xf32, #tpu.memory_space<vmem>>, vector<16x72xf32>,
    %c0_5 = arith.constant 0 : index
    %c0_6 = arith.constant 0 : index
    %5 = vector.load %arg3[%c0_5, %c0_6] : memref<16x8xf32, #tpu.memory_space<vmem>>, vector<16x8xf32>
    %c0_7 = arith.constant 0 : index
    %c0_8 = arith.constant 0 : index
    %c0_9 = arith.constant 0 : index
    %6 = vector.load %arg1[%c0_7, %c0_8, %c0_9] : memref<1x8x32xf32, #tpu.memory_space<vmem>>, vector<1x8x32xf32>
    %7 = vector.shape_cast %6 : vector<1x8x32xf32> to vector<8x32xf32>
    %cst_10 = arith.constant dense<0.000000e+00> : vector<16x32xf32>
    %8 = tpu.matmul %5, %7, %cst_10 {dimension_numbers = #tpu.dot_dimension_numbers<[1], [0], [0], [1], [0, 0, 1, 1], [], []>} : vector<16x8xf32>, vector<8x32xf32>, vector<16x32xf32> -> vector<16x32xf32>
    %c0_11 = arith.constant 0 : index
    %c0_12 = arith.constant 0 : index
    %9 = vector.load %arg4[%c0_11, %c0_12] : memref<32x72xf32, #tpu.memory_space<vmem>>, vector<32x72xf32>
    %cst_13 = arith.constant dense<0.000000e+00> : vector<16x72xf32>
    %10 = tpu.matmul %8, %9, %cst_13 {dimension_numbers = #tpu.dot_dimension_numbers<[1], [0], [0], [1], [0, 0, 1, 1], [], []>} : vector<16x32xf32>, vector<32x72xf32>, vector<16x72xf32> -> vector<16x72xf32>
    %c1_14 = arith.constant 1 : index
    %c72 = arith.constant 72 : index
    %11 = vector.load %arg10[%c1_14, %c72] : memref<18x144xf32, #tpu.memory_space<vmem>>, vector<16x72xf32>
    tpu.vector_store %arg10[%c1_14, %c72], %10 {strides = array<i32>} : memref<18x144xf32, #tpu.memory_space<vmem>>, vector<16x72xf32>,
    %c0_15 = arith.constant 0 : index
    %c0_16 = arith.constant 0 : index
    %12 = vector.load %arg10[%c0_15, %c0_16] : memref<18x144xf32, #tpu.memory_space<vmem>>, vector<16x144xf32>
    %c0_17 = arith.constant 0 : index
    %c0_18 = arith.constant 0 : index
    %c0_19 = arith.constant 0 : index
    %13 = vector.load %arg5[%c0_17, %c0_18, %c0_19] : memref<3x144x72xf32, #tpu.memory_space<vmem>>, vector<1x144x72xf32>
    %14 = vector.shape_cast %13 : vector<1x144x72xf32> to vector<144x72xf32>
    %cst_20 = arith.constant dense<0.000000e+00> : vector<16x72xf32>
    %15 = tpu.matmul %12, %14, %cst_20 {dimension_numbers = #tpu.dot_dimension_numbers<[1], [0], [0], [1], [0, 0, 1, 1], [], []>} : vector<16x144xf32>, vector<144x72xf32>, vector<16x72xf32> -> vector<16x72xf32>
    %c1_21 = arith.constant 1 : index
    %c0_22 = arith.constant 0 : index
    %16 = vector.load %arg10[%c1_21, %c0_22] : memref<18x144xf32, #tpu.memory_space<vmem>>, vector<16x144xf32>
    %c1_23 = arith.constant 1 : index
    %c0_24 = arith.constant 0 : index
    %c0_25 = arith.constant 0 : index
    %17 = vector.load %arg5[%c1_23, %c0_24, %c0_25] : memref<3x144x72xf32, #tpu.memory_space<vmem>>, vector<1x144x72xf32>
    %18 = vector.shape_cast %17 : vector<1x144x72xf32> to vector<144x72xf32>
    %cst_26 = arith.constant dense<0.000000e+00> : vector<16x72xf32>
    %19 = tpu.matmul %16, %18, %cst_26 {dimension_numbers = #tpu.dot_dimension_numbers<[1], [0], [0], [1], [0, 0, 1, 1], [], []>} : vector<16x144xf32>, vector<144x72xf32>, vector<16x72xf32> -> vector<16x72xf32>
    %20 = arith.addf %15, %19 : vector<16x72xf32>
    %c2 = arith.constant 2 : index
    %c0_27 = arith.constant 0 : index
    %21 = vector.load %arg10[%c2, %c0_27] : memref<18x144xf32, #tpu.memory_space<vmem>>, vector<16x144xf32>
    %c2_28 = arith.constant 2 : index
    %c0_29 = arith.constant 0 : index
    %c0_30 = arith.constant 0 : index
    %22 = vector.load %arg5[%c2_28, %c0_29, %c0_30] : memref<3x144x72xf32, #tpu.memory_space<vmem>>, vector<1x144x72xf32>
    %23 = vector.shape_cast %22 : vector<1x144x72xf32> to vector<144x72xf32>
    %cst_31 = arith.constant dense<0.000000e+00> : vector<16x72xf32>
    %24 = tpu.matmul %21, %23, %cst_31 {dimension_numbers = #tpu.dot_dimension_numbers<[1], [0], [0], [1], [0, 0, 1, 1], [], []>} : vector<16x144xf32>, vector<144x72xf32>, vector<16x72xf32> -> vector<16x72xf32>
    %25 = arith.addf %20, %24 : vector<16x72xf32>
    %c0_32 = arith.constant 0 : index
    %c0_33 = arith.constant 0 : index
    %26 = vector.load %arg6[%c0_32, %c0_33] : memref<1x72xf32, #tpu.memory_space<vmem>>, vector<1x72xf32>
    %27 = vector.broadcast %26 : vector<1x72xf32> to vector<16x72xf32>
    %28 = arith.addf %25, %27 : vector<16x72xf32>
    %cst_34 = arith.constant 0.000000e+00 : f32
    %29 = vector.broadcast %cst_34 : f32 to vector<16x72xf32>
    %30 = arith.maximumf %28, %29 : vector<16x72xf32>
    %cst_35 = arith.constant 0.000000e+00 : f32
    %31 = vector.broadcast %cst_35 : f32 to vector<1x72xf32>
    %c0_36 = arith.constant 0 : index
    %c0_37 = arith.constant 0 : index
    %32 = vector.load %arg11[%c0_36, %c0_37] : memref<18x72xf32, #tpu.memory_space<vmem>>, vector<1x72xf32>
    tpu.vector_store %arg11[%c0_36, %c0_37], %31 {strides = array<i32>} : memref<18x72xf32, #tpu.memory_space<vmem>>, vector<1x72xf32>,
    %c17 = arith.constant 17 : index
    %c0_38 = arith.constant 0 : index
    %33 = vector.load %arg11[%c17, %c0_38] : memref<18x72xf32, #tpu.memory_space<vmem>>, vector<1x72xf32>
    tpu.vector_store %arg11[%c17, %c0_38], %31 {strides = array<i32>} : memref<18x72xf32, #tpu.memory_space<vmem>>, vector<1x72xf32>,
    %c1_39 = arith.constant 1 : index
    %c0_40 = arith.constant 0 : index
    %34 = vector.load %arg11[%c1_39, %c0_40] : memref<18x72xf32, #tpu.memory_space<vmem>>, vector<16x72xf32>
    tpu.vector_store %arg11[%c1_39, %c0_40], %30 {strides = array<i32>} : memref<18x72xf32, #tpu.memory_space<vmem>>, vector<16x72xf32>,
    %c0_41 = arith.constant 0 : index
    %c0_42 = arith.constant 0 : index
    %35 = vector.load %arg11[%c0_41, %c0_42] : memref<18x72xf32, #tpu.memory_space<vmem>>, vector<16x72xf32>
    %c0_43 = arith.constant 0 : index
    %c0_44 = arith.constant 0 : index
    %c0_45 = arith.constant 0 : index
    %36 = vector.load %arg7[%c0_43, %c0_44, %c0_45] : memref<3x72x128xf32, #tpu.memory_space<vmem>>, vector<1x72x128xf32>
    %37 = vector.shape_cast %36 : vector<1x72x128xf32> to vector<72x128xf32>
    %cst_46 = arith.constant dense<0.000000e+00> : vector<16x128xf32>
    %38 = tpu.matmul %35, %37, %cst_46 {dimension_numbers = #tpu.dot_dimension_numbers<[1], [0], [0], [1], [0, 0, 1, 1], [], []>} : vector<16x72xf32>, vector<72x128xf32>, vector<16x128xf32> -> vector<16x128xf32>
    %c1_47 = arith.constant 1 : index
    %c0_48 = arith.constant 0 : index
    %39 = vector.load %arg11[%c1_47, %c0_48] : memref<18x72xf32, #tpu.memory_space<vmem>>, vector<16x72xf32>
    %c1_49 = arith.constant 1 : index
    %c0_50 = arith.constant 0 : index
    %c0_51 = arith.constant 0 : index
    %40 = vector.load %arg7[%c1_49, %c0_50, %c0_51] : memref<3x72x128xf32, #tpu.memory_space<vmem>>, vector<1x72x128xf32>
    %41 = vector.shape_cast %40 : vector<1x72x128xf32> to vector<72x128xf32>
    %cst_52 = arith.constant dense<0.000000e+00> : vector<16x128xf32>
    %42 = tpu.matmul %39, %41, %cst_52 {dimension_numbers = #tpu.dot_dimension_numbers<[1], [0], [0], [1], [0, 0, 1, 1], [], []>} : vector<16x72xf32>, vector<72x128xf32>, vector<16x128xf32> -> vector<16x128xf32>
    %43 = arith.addf %38, %42 : vector<16x128xf32>
    %c2_53 = arith.constant 2 : index
    %c0_54 = arith.constant 0 : index
    %44 = vector.load %arg11[%c2_53, %c0_54] : memref<18x72xf32, #tpu.memory_space<vmem>>, vector<16x72xf32>
    %c2_55 = arith.constant 2 : index
    %c0_56 = arith.constant 0 : index
    %c0_57 = arith.constant 0 : index
    %45 = vector.load %arg7[%c2_55, %c0_56, %c0_57] : memref<3x72x128xf32, #tpu.memory_space<vmem>>, vector<1x72x128xf32>
    %46 = vector.shape_cast %45 : vector<1x72x128xf32> to vector<72x128xf32>
    %cst_58 = arith.constant dense<0.000000e+00> : vector<16x128xf32>
    %47 = tpu.matmul %44, %46, %cst_58 {dimension_numbers = #tpu.dot_dimension_numbers<[1], [0], [0], [1], [0, 0, 1, 1], [], []>} : vector<16x72xf32>, vector<72x128xf32>, vector<16x128xf32> -> vector<16x128xf32>
    %48 = arith.addf %43, %47 : vector<16x128xf32>
    %c0_59 = arith.constant 0 : index
    %c0_60 = arith.constant 0 : index
    %49 = vector.load %arg8[%c0_59, %c0_60] : memref<1x128xf32, #tpu.memory_space<vmem>>, vector<1x128xf32>
    %50 = vector.broadcast %49 : vector<1x128xf32> to vector<16x128xf32>
    %51 = arith.addf %48, %50 : vector<16x128xf32>
    %cst_61 = arith.constant 0.000000e+00 : f32
    %52 = vector.broadcast %cst_61 : f32 to vector<16x128xf32>
    %53 = arith.maximumf %51, %52 : vector<16x128xf32>
    %c0_62 = arith.constant 0 : index
    %c0_63 = arith.constant 0 : index
    %c0_64 = arith.constant 0 : index
    %54 = vector.load %arg9[%c0_62, %c0_63, %c0_64] : memref<1x16x128xf32, #tpu.memory_space<vmem>>, vector<1x16x128xf32>
    %55 = vector.shape_cast %54 : vector<1x16x128xf32> to vector<16x128xf32>
    %56 = vector.shape_cast %53 : vector<16x128xf32> to vector<1x16x128xf32>
    tpu.vector_store %arg9[%c0_62, %c0_63, %c0_64], %56 {strides = array<i32>} : memref<1x16x128xf32, #tpu.memory_space<vmem>>, vector<1x16x128xf32>,
    return
  }
  func.func @transform_0(%arg0: i32) -> (i32, i32, i32) {
    %c0_i32 = arith.constant 0 : i32
    %c0_i32_0 = arith.constant 0 : i32
    %c0_i32_1 = arith.constant 0 : i32
    return %arg0, %c0_i32, %c0_i32_0 : i32, i32, i32
  }
  func.func @transform_1(%arg0: i32) -> (i32, i32, i32) {
    %c0_i32 = arith.constant 0 : i32
    %c0_i32_0 = arith.constant 0 : i32
    %c0_i32_1 = arith.constant 0 : i32
    return %arg0, %c0_i32, %c0_i32_0 : i32, i32, i32
  }
  func.func @transform_2(%arg0: i32) -> (i32, i32) {
    %c0_i32 = arith.constant 0 : i32
    %c0_i32_0 = arith.constant 0 : i32
    %c0_i32_1 = arith.constant 0 : i32
    return %c0_i32, %c0_i32_0 : i32, i32
  }
  func.func @transform_3(%arg0: i32) -> (i32, i32) {
    %c0_i32 = arith.constant 0 : i32
    %c0_i32_0 = arith.constant 0 : i32
    %c0_i32_1 = arith.constant 0 : i32
    return %c0_i32, %c0_i32_0 : i32, i32
  }
  func.func @transform_4(%arg0: i32) -> (i32, i32, i32) {
    %c0_i32 = arith.constant 0 : i32
    %c0_i32_0 = arith.constant 0 : i32
    %c0_i32_1 = arith.constant 0 : i32
    %c0_i32_2 = arith.constant 0 : i32
    return %c0_i32, %c0_i32_0, %c0_i32_1 : i32, i32, i32
  }
  func.func @transform_5(%arg0: i32) -> (i32, i32) {
    %c0_i32 = arith.constant 0 : i32
    %c0_i32_0 = arith.constant 0 : i32
    %c0_i32_1 = arith.constant 0 : i32
    return %c0_i32, %c0_i32_0 : i32, i32
  }
  func.func @transform_6(%arg0: i32) -> (i32, i32, i32) {
    %c0_i32 = arith.constant 0 : i32
    %c0_i32_0 = arith.constant 0 : i32
    %c0_i32_1 = arith.constant 0 : i32
    %c0_i32_2 = arith.constant 0 : i32
    return %c0_i32, %c0_i32_0, %c0_i32_1 : i32, i32, i32
  }
  func.func @transform_7(%arg0: i32) -> (i32, i32) {
    %c0_i32 = arith.constant 0 : i32
    %c0_i32_0 = arith.constant 0 : i32
    %c0_i32_1 = arith.constant 0 : i32
    return %c0_i32, %c0_i32_0 : i32, i32
  }
  func.func @transform_8(%arg0: i32) -> (i32, i32, i32) {
    %c0_i32 = arith.constant 0 : i32
    %c0_i32_0 = arith.constant 0 : i32
    %c0_i32_1 = arith.constant 0 : i32
    return %arg0, %c0_i32, %c0_i32_0 : i32, i32, i32
  }
}

</mosaic_0001>

<llo_original>
// kernel: tpu_custom_call.1
$region0: #{tpu_custom_call.1}
  #allocation0 [shape = 'u32[]', space=smem, size = 0x4, offset = 0x4, fixed_abs, tag = 'smem constant byte address 0x4 - core index']
  #allocation1 [shape = 'u32[144,128]{1,0:T(1,128)}', space=vmem, size = 0x12000, scoped, tag = 'internal scratch']
  #allocation2 [shape = 'f32[18,144]{1,0:T(8,128)}', space=vmem, size = 0x6000, scoped, tag = 'scratch operand']
  #allocation3 [shape = 'f32[18,72]{1,0:T(8,128)}', space=vmem, size = 0x3000, scoped, tag = 'scratch operand']
  %s0 = inlined_call_operand.vmem [shape: f32[2,8,32], index: 0, kind: input, shape index: {}]
  %s1 = inlined_call_operand.hbm [shape: f32[2,16,72], index: 1, kind: input, shape index: {}]
  %s2 = inlined_call_operand.vmem [shape: f32[16,8], index: 2, kind: input, shape index: {}]
  %s3 = inlined_call_operand.hbm [shape: f32[32,72], index: 3, kind: input, shape index: {}]
  %s4 = inlined_call_operand.hbm [shape: f32[3,144,72], index: 4, kind: input, shape index: {}]
  %s5 = inlined_call_operand.vmem [shape: f32[1,72], index: 5, kind: input, shape index: {}]
  %s6 = inlined_call_operand.hbm [shape: f32[3,72,128], index: 6, kind: input, shape index: {}]
  %s7 = inlined_call_operand.vmem [shape: f32[1,128], index: 7, kind: input, shape index: {}]
  %s8 = inlined_call_operand.hbm [shape: f32[2,16,128], index: 8, kind: output, shape index: {}]
  %s9 = sld [smem:[#allocation0]]
  $region81: #{tpu_custom_call.1} parent=0
    _
  %s11 = ssub.s32 1, %s9
  %s12 = scalar_select 0, %s11, %s9
  $region1: #{tpu_custom_call.1} parent=0
    #allocation4 [shape = 'u8[16384]{0}', space=vmem, size = 0x4000, scoped, tag = 'input window, operand 1']
    #allocation5 [shape = 's32[2]{0}', space=sflag, size = 0x8, scoped, tag = 'scoped memory for tpu_custom_call.1']
    #allocation6 [shape = 's32[2]{0}', space=sflag, size = 0x8, scoped, tag = 'scoped memory for tpu_custom_call.1']
    #allocation7 [shape = 'u8[16384]{0}', space=vmem, size = 0x4000, scoped, tag = 'input window, operand 3, single buffered']
    #allocation8 [shape = 's32[1]{0}', space=sflag, size = 0x4, scoped, tag = 'scoped memory for tpu_custom_call.1']
    #allocation9 [shape = 'u8[221184]{0}', space=vmem, size = 0x36000, scoped, tag = 'input window, operand 4, single buffered']
    #allocation10 [shape = 'u8[110592]{0}', space=vmem, size = 0x1b000, scoped, tag = 'input window, operand 6, single buffered']
    #allocation11 [shape = 's32[1]{0}', space=sflag, size = 0x4, scoped, tag = 'scoped memory for tpu_custom_call.1']
    #allocation12 [shape = 'u8[16384]{0}', space=vmem, size = 0x4000, scoped, tag = 'output window, operand 0']
    %13 = vsyncpa [#allocation5], 0
    %s14 = scalar_lea.sflag [#allocation5], 1
    %15 = vsyncpa %s14, 0
    %16 = vsyncpa [#allocation8], 0
    %17 = vsyncpa [#allocation11], 0
    %18 = vsyncpa [#allocation6], 0
    %s19 = scalar_lea.sflag [#allocation6], 1
    %20 = vsyncpa %s19, 0
    loop: start=0, step=1, limit=4
    $region2: #{tpu_custom_call.1} parent=1 // loop_pre_header
      _
    $region3: #{tpu_custom_call.1} parent=1 // loop_header
      %s22 = sphi 0, %s26
      %p23 = scmp.ge.s32.totalorder %s22, 4
      %s32 = sphi 0, %s34
      %s35 = sphi 0, %s32
      %s36 = sphi 0, %s35
      %s52 = sphi 0, %s36
      %s58 = sphi 0, %s60
      %s61 = sphi 0, %s58
      %s62 = sphi 0, %s61
      %s78 = sphi 0, %s62
      %s82 = sphi 0, %s82
      %s84 = sphi 0, %s82
      %s85 = sphi 0, %s84
      %s99 = sphi 0, %s85
      %s103 = sphi 0, %s103
      %s105 = sphi 0, %s103
      %s106 = sphi 0, %s105
      %s120 = sphi 0, %s106
      %s124 = sphi 0, %s124
      %s126 = sphi 0, %s124
      %s127 = sphi 0, %s126
      %s141 = sphi 0, %s127
      %s145 = sphi 0, %s145
      %s147 = sphi 0, %s145
      %s148 = sphi 0, %s147
      %s162 = sphi 0, %s148
      %s166 = sphi 0, %s166
      %s168 = sphi 0, %s166
      %s169 = sphi 0, %s168
      %s183 = sphi 0, %s169
      %s187 = sphi 0, %s187
      %s189 = sphi 0, %s187
      %s190 = sphi 0, %s189
      %s204 = sphi 0, %s190
      %s210 = sphi 0, %s212
      %s213 = sphi 0, %s210
      %s214 = sphi 0, %s213
      %s230 = sphi 0, %s214
    $region4: #{tpu_custom_call.1} parent=1 // loop_header_branch
      %25 = sbr.rel (%p23) target = $region8
    $region5: #{tpu_custom_call.1} parent=1 // loop_body
      %s27 = ssub.s32 %s22, 1
      %s28 = ssub.s32 %s22, 2
      %s29 = sadd.s32 %s22, 1
      %s30 = ssub.s32 %s22, %s29
      %p31 = scmp.eq.s32.totalorder %s30, 0
      %s33 = sadd.s32 %s32, 1
      %s34 = scalar_select %p31, %s32, %s33
      %p37 = pneg %p31
      %p38 = scmp.eq.s32.totalorder %s22, 1
      %p39 = por %p37, %p38
      %p40 = scmp.ne.s32.totalorder %s32, %s35
      %p41 = scmp.eq.s32.totalorder %s22, 0
      %p42 = por %p40, %p41
      %p43 = scmp.ne.s32.totalorder %s32, %s35
      %p44 = scmp.eq.s32.totalorder %s27, 1
      %p45 = por %p43, %p44
      %p46 = scmp.ne.s32.totalorder %s35, %s36
      %p47 = scmp.eq.s32.totalorder %s27, 0
      %p48 = por %p46, %p47
      %p49 = scmp.ne.s32.totalorder %s35, %s36
      %p50 = scmp.eq.s32.totalorder %s28, 1
      %p51 = por %p49, %p50
      %p53 = scmp.ne.s32.totalorder %s36, %s52
      %p54 = scmp.eq.s32.totalorder %s28, 0
      %p55 = por %p53, %p54
      %s56 = ssub.s32 %s22, %s29
      %p57 = scmp.eq.s32.totalorder %s56, 0
      %s59 = sadd.s32 %s58, 1
      %s60 = scalar_select %p57, %s58, %s59
      %p63 = pneg %p57
      %p64 = scmp.eq.s32.totalorder %s22, 1
      %p65 = por %p63, %p64
      %p66 = scmp.ne.s32.totalorder %s58, %s61
      %p67 = scmp.eq.s32.totalorder %s22, 0
      %p68 = por %p66, %p67
      %p69 = scmp.ne.s32.totalorder %s58, %s61
      %p70 = scmp.eq.s32.totalorder %s27, 1
      %p71 = por %p69, %p70
      %p72 = scmp.ne.s32.totalorder %s61, %s62
      %p73 = scmp.eq.s32.totalorder %s27, 0
      %p74 = por %p72, %p73
      %p75 = scmp.ne.s32.totalorder %s61, %s62
      %p76 = scmp.eq.s32.totalorder %s28, 1
      %p77 = por %p75, %p76
      %p79 = scmp.ne.s32.totalorder %s62, %s78
      %p80 = scmp.eq.s32.totalorder %s28, 0
      %p81 = por %p79, %p80
      %s83 = sadd.s32 %s82, 1
      %p86 = scmp.eq.s32.totalorder %s22, 1
      %p87 = scmp.ne.s32.totalorder %s82, %s84
      %p88 = scmp.eq.s32.totalorder %s22, 0
      %p89 = por %p87, %p88
      %p90 = scmp.ne.s32.totalorder %s82, %s84
      %p91 = scmp.eq.s32.totalorder %s27, 1
      %p92 = por %p90, %p91
      %p93 = scmp.ne.s32.totalorder %s84, %s85
      %p94 = scmp.eq.s32.totalorder %s27, 0
      %p95 = por %p93, %p94
      %p96 = scmp.ne.s32.totalorder %s84, %s85
      %p97 = scmp.eq.s32.totalorder %s28, 1
      %p98 = por %p96, %p97
      %p100 = scmp.ne.s32.totalorder %s85, %s99
      %p101 = scmp.eq.s32.totalorder %s28, 0
      %p102 = por %p100, %p101
      %s104 = sadd.s32 %s103, 1
      %p107 = scmp.eq.s32.totalorder %s22, 1
      %p108 = scmp.ne.s32.totalorder %s103, %s105
      %p109 = scmp.eq.s32.totalorder %s22, 0
      %p110 = por %p108, %p109
      %p111 = scmp.ne.s32.totalorder %s103, %s105
      %p112 = scmp.eq.s32.totalorder %s27, 1
      %p113 = por %p111, %p112
      %p114 = scmp.ne.s32.totalorder %s105, %s106
      %p115 = scmp.eq.s32.totalorder %s27, 0
      %p116 = por %p114, %p115
      %p117 = scmp.ne.s32.totalorder %s105, %s106
      %p118 = scmp.eq.s32.totalorder %s28, 1
      %p119 = por %p117, %p118
      %p121 = scmp.ne.s32.totalorder %s106, %s120
      %p122 = scmp.eq.s32.totalorder %s28, 0
      %p123 = por %p121, %p122
      %s125 = sadd.s32 %s124, 1
      %p128 = scmp.eq.s32.totalorder %s22, 1
      %p129 = scmp.ne.s32.totalorder %s124, %s126
      %p130 = scmp.eq.s32.totalorder %s22, 0
      %p131 = por %p129, %p130
      %p132 = scmp.ne.s32.totalorder %s124, %s126
      %p133 = scmp.eq.s32.totalorder %s27, 1
      %p134 = por %p132, %p133
      %p135 = scmp.ne.s32.totalorder %s126, %s127
      %p136 = scmp.eq.s32.totalorder %s27, 0
      %p137 = por %p135, %p136
      %p138 = scmp.ne.s32.totalorder %s126, %s127
      %p139 = scmp.eq.s32.totalorder %s28, 1
      %p140 = por %p138, %p139
      %p142 = scmp.ne.s32.totalorder %s127, %s141
      %p143 = scmp.eq.s32.totalorder %s28, 0
      %p144 = por %p142, %p143
      %s146 = sadd.s32 %s145, 1
      %p149 = scmp.eq.s32.totalorder %s22, 1
      %p150 = scmp.ne.s32.totalorder %s145, %s147
      %p151 = scmp.eq.s32.totalorder %s22, 0
      %p152 = por %p150, %p151
      %p153 = scmp.ne.s32.totalorder %s145, %s147
      %p154 = scmp.eq.s32.totalorder %s27, 1
      %p155 = por %p153, %p154
      %p156 = scmp.ne.s32.totalorder %s147, %s148
      %p157 = scmp.eq.s32.totalorder %s27, 0
      %p158 = por %p156, %p157
      %p159 = scmp.ne.s32.totalorder %s147, %s148
      %p160 = scmp.eq.s32.totalorder %s28, 1
      %p161 = por %p159, %p160
      %p163 = scmp.ne.s32.totalorder %s148, %s162
      %p164 = scmp.eq.s32.totalorder %s28, 0
      %p165 = por %p163, %p164
      %s167 = sadd.s32 %s166, 1
      %p170 = scmp.eq.s32.totalorder %s22, 1
      %p171 = scmp.ne.s32.totalorder %s166, %s168
      %p172 = scmp.eq.s32.totalorder %s22, 0
      %p173 = por %p171, %p172
      %p174 = scmp.ne.s32.totalorder %s166, %s168
      %p175 = scmp.eq.s32.totalorder %s27, 1
      %p176 = por %p174, %p175
      %p177 = scmp.ne.s32.totalorder %s168, %s169
      %p178 = scmp.eq.s32.totalorder %s27, 0
      %p179 = por %p177, %p178
      %p180 = scmp.ne.s32.totalorder %s168, %s169
      %p181 = scmp.eq.s32.totalorder %s28, 1
      %p182 = por %p180, %p181
      %p184 = scmp.ne.s32.totalorder %s169, %s183
      %p185 = scmp.eq.s32.totalorder %s28, 0
      %p186 = por %p184, %p185
      %s188 = sadd.s32 %s187, 1
      %p191 = scmp.eq.s32.totalorder %s22, 1
      %p192 = scmp.ne.s32.totalorder %s187, %s189
      %p193 = scmp.eq.s32.totalorder %s22, 0
      %p194 = por %p192, %p193
      %p195 = scmp.ne.s32.totalorder %s187, %s189
      %p196 = scmp.eq.s32.totalorder %s27, 1
      %p197 = por %p195, %p196
      %p198 = scmp.ne.s32.totalorder %s189, %s190
      %p199 = scmp.eq.s32.totalorder %s27, 0
      %p200 = por %p198, %p199
      %p201 = scmp.ne.s32.totalorder %s189, %s190
      %p202 = scmp.eq.s32.totalorder %s28, 1
      %p203 = por %p201, %p202
      %p205 = scmp.ne.s32.totalorder %s190, %s204
      %p206 = scmp.eq.s32.totalorder %s28, 0
      %p207 = por %p205, %p206
      %s208 = ssub.s32 %s22, %s29
      %p209 = scmp.eq.s32.totalorder %s208, 0
      %s211 = sadd.s32 %s210, 1
      %s212 = scalar_select %p209, %s210, %s211
      %p215 = pneg %p209
      %p216 = scmp.eq.s32.totalorder %s22, 1
      %p217 = por %p215, %p216
      %p218 = scmp.ne.s32.totalorder %s210, %s213
      %p219 = scmp.eq.s32.totalorder %s22, 0
      %p220 = por %p218, %p219
      %p221 = scmp.ne.s32.totalorder %s210, %s213
      %p222 = scmp.eq.s32.totalorder %s27, 1
      %p223 = por %p221, %p222
      %p224 = scmp.ne.s32.totalorder %s213, %s214
      %p225 = scmp.eq.s32.totalorder %s27, 0
      %p226 = por %p224, %p225
      %p227 = scmp.ne.s32.totalorder %s213, %s214
      %p228 = scmp.eq.s32.totalorder %s28, 1
      %p229 = por %p227, %p228
      %p231 = scmp.ne.s32.totalorder %s214, %s230
      %p232 = scmp.eq.s32.totalorder %s28, 0
      %p233 = por %p231, %p232
      %p234 = scmp.le.s32.totalorder 1, %s22
      %p235 = scmp.lt.s32.totalorder %s22, 3
      %p236 = pnand %p234, %p235
      %p237 = pneg %p236
      // Predicated region
      $region9: #{tpu_custom_call.1} parent=5 // pred_check
        _
      $region10: #{tpu_custom_call.1} parent=5 // pred_check_branch
        %239 = sbr.rel (%p236) target = $region12
      $region11: #{tpu_custom_call.1} parent=5 // pred_region
        %s240 = ssub.s32 %s22, 1
        // Predicated region
        $region13: #{tpu_custom_call.1} parent=11 // pred_check
          %p241 = pneg %p95
        $region14: #{tpu_custom_call.1} parent=11 // pred_check_branch
          %243 = sbr.rel (%p241) target = $region16
        $region15: #{tpu_custom_call.1} parent=11 // pred_region
          _
        $region16: #{tpu_custom_call.1} parent=11 // pred_fallthru
          _
        // Predicated region
        $region17: #{tpu_custom_call.1} parent=11 // pred_check
          %p244 = pneg %p116
        $region18: #{tpu_custom_call.1} parent=11 // pred_check_branch
          %246 = sbr.rel (%p244) target = $region20
        $region19: #{tpu_custom_call.1} parent=11 // pred_region
          %s248 = ssub.s32 512, 512
          %249 = vsyncadd [#allocation8], %s248
          %s250 = sshll.u32 [#allocation7], 4
          %s251 = int_to_ptr.vmem [resolvable:$true] %s250
          %256 = dma.hbm_to_vmem [thread:$0]  %s3, 512, %s251, [#allocation8], 128, 128, 8
        $region20: #{tpu_custom_call.1} parent=11 // pred_fallthru
          _
        // Predicated region
        $region21: #{tpu_custom_call.1} parent=11 // pred_check
          %p257 = pneg %p137
        $region22: #{tpu_custom_call.1} parent=11 // pred_check_branch
          %259 = sbr.rel (%p257) target = $region24
        $region23: #{tpu_custom_call.1} parent=11 // pred_region
          %s261 = ssub.s32 6912, 6912
          %262 = vsyncadd [#allocation8], %s261
          %s263 = sshll.u32 [#allocation9], 4
          %s264 = int_to_ptr.vmem [resolvable:$true] %s263
          %269 = dma.hbm_to_vmem [thread:$0]  %s4, 6912, %s264, [#allocation8], 128, 128, 8
        $region24: #{tpu_custom_call.1} parent=11 // pred_fallthru
          _
        // Predicated region
        $region25: #{tpu_custom_call.1} parent=11 // pred_check
          %p270 = pneg %p158
        $region26: #{tpu_custom_call.1} parent=11 // pred_check_branch
          %272 = sbr.rel (%p270) target = $region28
        $region27: #{tpu_custom_call.1} parent=11 // pred_region
          _
        $region28: #{tpu_custom_call.1} parent=11 // pred_fallthru
          _
        // Predicated region
        $region29: #{tpu_custom_call.1} parent=11 // pred_check
          %p273 = pneg %p179
        $region30: #{tpu_custom_call.1} parent=11 // pred_check_branch
          %275 = sbr.rel (%p273) target = $region32
        $region31: #{tpu_custom_call.1} parent=11 // pred_region
          %s277 = ssub.s32 3456, 3456
          %278 = vsyncadd [#allocation11], %s277
          %s279 = sshll.u32 [#allocation10], 4
          %s280 = int_to_ptr.vmem [resolvable:$true] %s279
          %285 = dma.hbm_to_vmem [thread:$0]  %s6, 3456, %s280, [#allocation11], 128, 128, 8
        $region32: #{tpu_custom_call.1} parent=11 // pred_fallthru
          _
        // Predicated region
        $region33: #{tpu_custom_call.1} parent=11 // pred_check
          %p286 = pneg %p200
        $region34: #{tpu_custom_call.1} parent=11 // pred_check_branch
          %288 = sbr.rel (%p286) target = $region36
        $region35: #{tpu_custom_call.1} parent=11 // pred_region
          _
        $region36: #{tpu_custom_call.1} parent=11 // pred_fallthru
          _
      $region12: #{tpu_custom_call.1} parent=5 // pred_fallthru
        _
      %p289 = scmp.lt.s32.totalorder %s22, 2
      // Predicated region
      $region37: #{tpu_custom_call.1} parent=5 // pred_check
        %p290 = pneg %p289
      $region38: #{tpu_custom_call.1} parent=5 // pred_check_branch
        %292 = sbr.rel (%p290) target = $region40
      $region39: #{tpu_custom_call.1} parent=5 // pred_region
        // Predicated region
        $region41: #{tpu_custom_call.1} parent=39 // pred_check
          %p293 = pneg %p42
        $region42: #{tpu_custom_call.1} parent=39 // pred_check_branch
          %295 = sbr.rel (%p293) target = $region44
        $region43: #{tpu_custom_call.1} parent=39 // pred_region
          %p296 = scmp.lt.s32.totalorder %s22, 1
          %s297 = scalar_select %p296, %s22, 1
          %s298 = smul.addr %s297, 8
          %s299 = scalar_lea.vmem %s0, %s298
        $region44: #{tpu_custom_call.1} parent=39 // pred_fallthru
          _
        // Predicated region
        $region45: #{tpu_custom_call.1} parent=39 // pred_check
          %p300 = pneg %p68
        $region46: #{tpu_custom_call.1} parent=39 // pred_check_branch
          %302 = sbr.rel (%p300) target = $region48
        $region47: #{tpu_custom_call.1} parent=39 // pred_region
          %s303 = sand.u32 %s58, 1
          %s304 = scalar_lea.sflag [#allocation5], %s303
          %s305 = sand.u32 %s58, 1
          %s306 = smul.addr %s305, 16
          %s307 = scalar_lea.vmem [#allocation4], %s306
          %s309 = ssub.s32 256, 256
          %310 = vsyncadd %s304, %s309
          %s311 = smul.addr %s22, 2
          %s312 = smul.addr %s311, 128
          %s313 = scalar_lea.hbm %s1, %s312
          %s314 = sshll.u32 %s307, 4
          %s315 = int_to_ptr.vmem [resolvable:$true] %s314
          %320 = dma.hbm_to_vmem [thread:$0]  %s313, 256, %s315, %s304, 128, 128, 8
        $region48: #{tpu_custom_call.1} parent=39 // pred_fallthru
          _
      $region40: #{tpu_custom_call.1} parent=5 // pred_fallthru
        _
      %p321 = scmp.le.s32.totalorder 1, %s22
      %p322 = scmp.lt.s32.totalorder %s22, 3
      %p323 = pnand %p321, %p322
      %p324 = pneg %p323
      // Predicated region
      $region49: #{tpu_custom_call.1} parent=5 // pred_check
        _
      $region50: #{tpu_custom_call.1} parent=5 // pred_check_branch
        %326 = sbr.rel (%p323) target = $region52
      $region51: #{tpu_custom_call.1} parent=5 // pred_region
        %s327 = ssub.s32 %s22, 1
        %s328 = sand.u32 %s61, 1
        %s329 = scalar_lea.sflag [#allocation5], %s328
        %s330 = sand.u32 %s61, 1
        %s331 = smul.addr %s330, 16
        %s332 = scalar_lea.vmem [#allocation4], %s331
        // Predicated region
        $region53: #{tpu_custom_call.1} parent=51 // pred_check
          %p333 = pneg %p74
        $region54: #{tpu_custom_call.1} parent=51 // pred_check_branch
          %335 = sbr.rel (%p333) target = $region56
        $region55: #{tpu_custom_call.1} parent=51 // pred_region
          %336 = dma.done %s329, 256
        $region56: #{tpu_custom_call.1} parent=51 // pred_fallthru
          _
        // Predicated region
        $region57: #{tpu_custom_call.1} parent=51 // pred_check
          %p337 = pneg %p116
        $region58: #{tpu_custom_call.1} parent=51 // pred_check_branch
          %339 = sbr.rel (%p337) target = $region60
        $region59: #{tpu_custom_call.1} parent=51 // pred_region
          %340 = dma.done [#allocation8], 512
        $region60: #{tpu_custom_call.1} parent=51 // pred_fallthru
          _
        // Predicated region
        $region61: #{tpu_custom_call.1} parent=51 // pred_check
          %p341 = pneg %p137
        $region62: #{tpu_custom_call.1} parent=51 // pred_check_branch
          %343 = sbr.rel (%p341) target = $region64
        $region63: #{tpu_custom_call.1} parent=51 // pred_region
          %344 = dma.done [#allocation8], 6912
        $region64: #{tpu_custom_call.1} parent=51 // pred_fallthru
          _
        // Predicated region
        $region65: #{tpu_custom_call.1} parent=51 // pred_check
          %p345 = pneg %p179
        $region66: #{tpu_custom_call.1} parent=51 // pred_check_branch
          %347 = sbr.rel (%p345) target = $region68
        $region67: #{tpu_custom_call.1} parent=51 // pred_region
          %348 = dma.done [#allocation11], 3456
        $region68: #{tpu_custom_call.1} parent=51 // pred_fallthru
          _
        %p349 = scmp.lt.s32.totalorder %s27, 1
        %s350 = scalar_select %p349, %s27, 1
        %s351 = smul.addr %s350, 8
        %s352 = scalar_lea.vmem %s0, %s351
        %p353 = pneg %p48
        %p354 = pneg %p45
        %s355 = sand.u32 %s61, 1
        %s356 = scalar_lea.sflag [#allocation5], %s355
        %s357 = sand.u32 %s61, 1
        %s358 = smul.addr %s357, 16
        %s359 = scalar_lea.vmem [#allocation4], %s358
        %p360 = pneg %p74
        %p361 = pneg %p71
        %p362 = pneg %p95
        %p363 = pneg %p92
        %p364 = pneg %p116
        %p365 = pneg %p113
        %p366 = pneg %p137
        %p367 = pneg %p134
        %p368 = pneg %p158
        %p369 = pneg %p155
        %p370 = pneg %p179
        %p371 = pneg %p176
        %p372 = pneg %p200
        %p373 = pneg %p197
        %p374 = pneg %p226
        %p375 = pneg %p223
        %s376 = sand.u32 %s213, 1
        %s377 = scalar_lea.sflag [#allocation6], %s376
        %s378 = sand.u32 %s213, 1
        %s379 = smul.addr %s378, 16
        %s380 = scalar_lea.vmem [#allocation12], %s379
        %p381 = scmp.lt.s32.totalorder %s27, 1
        %s382 = scalar_select %p381, %s27, 1
        %s383 = smul.addr %s382, 8
        %s384 = scalar_lea.vmem %s0, %s383
        %385 = vst [vmem:[#allocation2] sm:$0xff] 0.0
        %vm386 = vcmask 130048
        %387 = vst.msk [vmem:[#allocation2 + $0x8] sm:$0xff] %vm386, 0.0
        %388 = vst [vmem:[#allocation2 + $0x10] sm:$0xff] 0.0
        %389 = vst.msk [vmem:[#allocation2 + $0x18] sm:$0xff] %vm386, 0.0
        %390 = vst [vmem:[#allocation2 + $0x20] sm:$0x3] 0.0
        %vm391 = vcmask 123904
        %392 = vst.msk [vmem:[#allocation2 + $0x28] sm:$0x3] %vm391, 0.0
        %v393 = vld [vmem:[%s332] sm:$0xff]
        %v394 = vld [vmem:[%s332 + $0x8] sm:$0xff]
        %vm397 = vcmask 1040384
        %v398 = vrot.slane %v393, 7
        %v399 = vrot.slane %v394, 7
        %v400 = vsel %vm397, %v398, %v399
        %vm404 = vcmask 588801
        %405 = vst.msk [vmem:[#allocation2] sm:$0xfe] %vm404, %v398
        %vm406 = vcmask 588800
        %407 = vst.msk [vmem:[#allocation2 + $0x10] sm:$0xff] %vm406, %v400
        %vm408 = vcmask 581632
        %409 = vst.msk [vmem:[#allocation2 + $0x20] sm:$0x1] %vm408, %v399
        %v410 = vld [vmem:[%s2] sm:$0xff]
        %v411 = vld [vmem:[%s2 + $0x8] sm:$0xff]
        %v412 = vld [vmem:[%s384] sm:$0xff]
        %vm413 = vcmask 64512
        %v415 = vsel %vm413, %v410, 0
        %v418 = vsel %vm413, %v411, 0
        %420 = vmatprep.subr.mxu0 0.0
        %421 = vmatpush1.msra.mxu0 0.0
        %422 = vmatprep.subr.mxu0 0.0
        %423 = vmatpush1.msra.mxu0 0.0
        %424 = vmatprep.subr.mxu0 0.0
        %425 = vmatpush1.msra.mxu0 0.0
        %426 = vmatprep.subr.mxu0 0.0
        %427 = vmatpush1.msra.mxu0 0.0
        %428 = vmatprep.subr.mxu0 0.0
        %429 = vmatpush1.msra.mxu0 0.0
        %430 = vmatprep.subr.mxu0 0.0
        %431 = vmatpush1.msra.mxu0 0.0
        %432 = vmatprep.subr.mxu0 0.0
        %433 = vmatpush1.msra.mxu0 0.0
        %434 = vmatprep.subr.mxu0 0.0
        %435 = vmatpush1.msra.mxu0 0.0
        %436 = vmatprep.subr.mxu0 0.0
        %437 = vmatpush1.msra.mxu0 0.0
        %438 = vmatprep.subr.mxu0 0.0
        %439 = vmatpush1.msra.mxu0 0.0
        %440 = vmatprep.subr.mxu0 0.0
        %441 = vmatpush1.msra.mxu0 0.0
        %442 = vmatprep.subr.mxu0 0.0
        %443 = vmatpush1.msra.mxu0 0.0
        %444 = vmatprep.subr.mxu0 0.0
        %445 = vmatpush1.msra.mxu0 0.0
        %446 = vmatprep.subr.mxu0 0.0
        %447 = vmatpush1.msra.mxu0 0.0
        %448 = vmatprep.subr.mxu0 0.0
        %449 = vmatpush1.msra.mxu0 0.0
        %450 = vmatprep.subr.mxu0 0.0
        %451 = vmatpush1.msra.mxu0 %v412
        %452 = vmatprep.subr.mxu0 0.0
        %453 = vmatpush2.msra.mxu0 0.0
        %454 = vmatprep.subr.mxu0 0.0
        %455 = vmatpush2.msra.mxu0 0.0
        %456 = vmatprep.subr.mxu0 0.0
        %457 = vmatpush2.msra.mxu0 0.0
        %458 = vmatprep.subr.mxu0 0.0
        %459 = vmatpush2.msra.mxu0 0.0
        %460 = vmatprep.subr.mxu0 0.0
        %461 = vmatpush2.msra.mxu0 0.0
        %462 = vmatprep.subr.mxu0 0.0
        %463 = vmatpush2.msra.mxu0 0.0
        %464 = vmatprep.subr.mxu0 0.0
        %465 = vmatpush2.msra.mxu0 0.0
        %466 = vmatprep.subr.mxu0 0.0
        %467 = vmatpush2.msra.mxu0 0.0
        %468 = vmatprep.subr.mxu0 0.0
        %469 = vmatpush2.msra.mxu0 0.0
        %470 = vmatprep.subr.mxu0 0.0
        %471 = vmatpush2.msra.mxu0 0.0
        %472 = vmatprep.subr.mxu0 0.0
        %473 = vmatpush2.msra.mxu0 0.0
        %474 = vmatprep.subr.mxu0 0.0
        %475 = vmatpush2.msra.mxu0 0.0
        %476 = vmatprep.subr.mxu0 0.0
        %477 = vmatpush2.msra.mxu0 0.0
        %478 = vmatprep.subr.mxu0 0.0
        %479 = vmatpush2.msra.mxu0 0.0
        %480 = vmatprep.subr.mxu0 0.0
        %481 = vmatpush2.msra.mxu0 0.0
        %482 = vmatprep.subr.mxu0 0.0
        %483 = vmatpush2.msra.mxu0 0.0
        %484 = vmatprep.mubr.f32.mxu0 0.0
        %485 = vmatmul.mubr.f32.gmra.mxu0 %v415
        %v486 = vpop.f32.mrf.mxu0
        %v487 = vadd.f32 0.0, %v486
        %v488 = vpop.f32.mrf.mxu0
        %489 = vmatprep.mubr.f32.mxu0 0.0
        %490 = vmatmul.mubr.f32.gmra.mxu0 %v418
        %v491 = vpop.f32.mrf.mxu0
        %v492 = vadd.f32 0.0, %v491
        %v493 = vpop.f32.mrf.mxu0
        %494 = vdwg.mxu0
        %v495 = vld [vmem:[#allocation7] sm:$0xff]
        %v496 = vld [vmem:[#allocation7 + $0x8] sm:$0xff]
        %v497 = vld [vmem:[#allocation7 + $0x10] sm:$0xff]
        %v498 = vld [vmem:[#allocation7 + $0x18] sm:$0xff]
        %vm499 = vcmask 261120
        %v501 = vsel %vm499, %v487, 0
        %v504 = vsel %vm499, %v492, 0
        %506 = vmatprep.subr.mxu0 0.0
        %507 = vmatpush1.msra.mxu0 0.0
        %508 = vmatprep.subr.mxu0 0.0
        %509 = vmatpush1.msra.mxu0 0.0
        %510 = vmatprep.subr.mxu0 0.0
        %511 = vmatpush1.msra.mxu0 0.0
        %512 = vmatprep.subr.mxu0 0.0
        %513 = vmatpush1.msra.mxu0 0.0
        %514 = vmatprep.subr.mxu0 0.0
        %515 = vmatpush1.msra.mxu0 0.0
        %516 = vmatprep.subr.mxu0 0.0
        %517 = vmatpush1.msra.mxu0 0.0
        %518 = vmatprep.subr.mxu0 0.0
        %519 = vmatpush1.msra.mxu0 0.0
        %520 = vmatprep.subr.mxu0 0.0
        %521 = vmatpush1.msra.mxu0 0.0
        %522 = vmatprep.subr.mxu0 0.0
        %523 = vmatpush1.msra.mxu0 0.0
        %524 = vmatprep.subr.mxu0 0.0
        %525 = vmatpush1.msra.mxu0 0.0
        %526 = vmatprep.subr.mxu0 0.0
        %527 = vmatpush1.msra.mxu0 0.0
        %528 = vmatprep.subr.mxu0 0.0
        %529 = vmatpush1.msra.mxu0 0.0
        %530 = vmatprep.subr.mxu0 0.0
        %531 = vmatpush1.msra.mxu0 %v498
        %532 = vmatprep.subr.mxu0 0.0
        %533 = vmatpush1.msra.mxu0 %v497
        %534 = vmatprep.subr.mxu0 0.0
        %535 = vmatpush1.msra.mxu0 %v496
        %536 = vmatprep.subr.mxu0 0.0
        %537 = vmatpush1.msra.mxu0 %v495
        %538 = vmatprep.subr.mxu0 0.0
        %539 = vmatpush2.msra.mxu0 0.0
        %540 = vmatprep.subr.mxu0 0.0
        %541 = vmatpush2.msra.mxu0 0.0
        %542 = vmatprep.subr.mxu0 0.0
        %543 = vmatpush2.msra.mxu0 0.0
        %544 = vmatprep.subr.mxu0 0.0
        %545 = vmatpush2.msra.mxu0 0.0
        %546 = vmatprep.subr.mxu0 0.0
        %547 = vmatpush2.msra.mxu0 0.0
        %548 = vmatprep.subr.mxu0 0.0
        %549 = vmatpush2.msra.mxu0 0.0
        %550 = vmatprep.subr.mxu0 0.0
        %551 = vmatpush2.msra.mxu0 0.0
        %552 = vmatprep.subr.mxu0 0.0
        %553 = vmatpush2.msra.mxu0 0.0
        %554 = vmatprep.subr.mxu0 0.0
        %555 = vmatpush2.msra.mxu0 0.0
        %556 = vmatprep.subr.mxu0 0.0
        %557 = vmatpush2.msra.mxu0 0.0
        %558 = vmatprep.subr.mxu0 0.0
        %559 = vmatpush2.msra.mxu0 0.0
        %560 = vmatprep.subr.mxu0 0.0
        %561 = vmatpush2.msra.mxu0 0.0
        %562 = vmatprep.subr.mxu0 0.0
        %563 = vmatpush2.msra.mxu0 0.0
        %564 = vmatprep.subr.mxu0 0.0
        %565 = vmatpush2.msra.mxu0 0.0
        %566 = vmatprep.subr.mxu0 0.0
        %567 = vmatpush2.msra.mxu0 0.0
        %568 = vmatprep.subr.mxu0 0.0
        %569 = vmatpush2.msra.mxu0 0.0
        %570 = vmatprep.mubr.f32.mxu0 0.0
        %571 = vmatmul.mubr.f32.gmra.mxu0 %v501
        %v572 = vpop.f32.mrf.mxu0
        %v573 = vadd.f32 0.0, %v572
        %v574 = vpop.f32.mrf.mxu0
        %575 = vmatprep.mubr.f32.mxu0 0.0
        %576 = vmatmul.mubr.f32.gmra.mxu0 %v504
        %v577 = vpop.f32.mrf.mxu0
        %v578 = vadd.f32 0.0, %v577
        %v579 = vpop.f32.mrf.mxu0
        %580 = vdwg.mxu0
        %v583 = vrot.slane %v573, 7
        %v584 = vrot.slane %v578, 7
        %v585 = vsel %vm397, %v583, %v584
        %586 = vrot.lane.b32.xlu0 %v583, 72
        %v587 = vpop.permute.xlu0 %586
        %588 = vrot.lane.b32.xlu0 %v585, 72
        %v589 = vpop.permute.xlu0 %588
        %590 = vrot.lane.b32.xlu0 %v584, 72
        %v591 = vpop.permute.xlu0 %590
        %vm595 = vcmask 1048129
        %596 = vst.msk [vmem:[#allocation2] sm:$0xfe] %vm595, %v587
        %vm597 = vcmask 130049
        %598 = vst.msk [vmem:[#allocation2 + $0x8] sm:$0xfe] %vm597, %v587
        %vm599 = vcmask 1048128
        %600 = vst.msk [vmem:[#allocation2 + $0x10] sm:$0xff] %vm599, %v589
        %601 = vst.msk [vmem:[#allocation2 + $0x18] sm:$0xff] %vm386, %v589
        %vm602 = vcmask 1040960
        %603 = vst.msk [vmem:[#allocation2 + $0x20] sm:$0x1] %vm602, %v591
        %vm604 = vcmask 122880
        %605 = vst.msk [vmem:[#allocation2 + $0x28] sm:$0x1] %vm604, %v591
        %v606 = vld [vmem:[#allocation2] sm:$0xff]
        %v607 = vld [vmem:[#allocation2 + $0x8] sm:$0xff]
        %v608 = vld [vmem:[#allocation2 + $0x10] sm:$0xff]
        %v609 = vld [vmem:[#allocation2 + $0x18] sm:$0xff]
        %v610 = vld [vmem:[#allocation9] sm:$0xff]
        %v611 = vld [vmem:[#allocation9 + $0x8] sm:$0xff]
        %v612 = vld [vmem:[#allocation9 + $0x10] sm:$0xff]
        %v613 = vld [vmem:[#allocation9 + $0x18] sm:$0xff]
        %v614 = vld [vmem:[#allocation9 + $0x20] sm:$0xff]
        %v615 = vld [vmem:[#allocation9 + $0x28] sm:$0xff]
        %v616 = vld [vmem:[#allocation9 + $0x30] sm:$0xff]
        %v617 = vld [vmem:[#allocation9 + $0x38] sm:$0xff]
        %v618 = vld [vmem:[#allocation9 + $0x40] sm:$0xff]
        %v619 = vld [vmem:[#allocation9 + $0x48] sm:$0xff]
        %v620 = vld [vmem:[#allocation9 + $0x50] sm:$0xff]
        %v621 = vld [vmem:[#allocation9 + $0x58] sm:$0xff]
        %v622 = vld [vmem:[#allocation9 + $0x60] sm:$0xff]
        %v623 = vld [vmem:[#allocation9 + $0x68] sm:$0xff]
        %v624 = vld [vmem:[#allocation9 + $0x70] sm:$0xff]
        %v625 = vld [vmem:[#allocation9 + $0x78] sm:$0xff]
        %v626 = vld [vmem:[#allocation9 + $0x80] sm:$0xff]
        %v627 = vld [vmem:[#allocation9 + $0x88] sm:$0xff]
        %v628 = vld [vmem:[#allocation2] sm:$0xfe]
        %v629 = vld [vmem:[#allocation2 + $0x8] sm:$0xfe]
        %v630 = vld [vmem:[#allocation2 + $0x20] sm:$0x1]
        %v631 = vld [vmem:[#allocation2 + $0x28] sm:$0x1]
        %s632 = scalar_lea.vmem [#allocation9], 144
        %v633 = vld [vmem:[%s632] sm:$0xff]
        %v634 = vld [vmem:[%s632 + $0x8] sm:$0xff]
        %v635 = vld [vmem:[%s632 + $0x10] sm:$0xff]
        %v636 = vld [vmem:[%s632 + $0x18] sm:$0xff]
        %v637 = vld [vmem:[%s632 + $0x20] sm:$0xff]
        %v638 = vld [vmem:[%s632 + $0x28] sm:$0xff]
        %v639 = vld [vmem:[%s632 + $0x30] sm:$0xff]
        %v640 = vld [vmem:[%s632 + $0x38] sm:$0xff]
        %v641 = vld [vmem:[%s632 + $0x40] sm:$0xff]
        %v642 = vld [vmem:[%s632 + $0x48] sm:$0xff]
        %v643 = vld [vmem:[%s632 + $0x50] sm:$0xff]
        %v644 = vld [vmem:[%s632 + $0x58] sm:$0xff]
        %v645 = vld [vmem:[%s632 + $0x60] sm:$0xff]
        %v646 = vld [vmem:[%s632 + $0x68] sm:$0xff]
        %v647 = vld [vmem:[%s632 + $0x70] sm:$0xff]
        %v648 = vld [vmem:[%s632 + $0x78] sm:$0xff]
        %v649 = vld [vmem:[%s632 + $0x80] sm:$0xff]
        %v650 = vld [vmem:[%s632 + $0x88] sm:$0xff]
        %vm657 = vcmask 1046528
        %v658 = vrot.slane %v628, 1
        %v659 = vrot.slane %v608, 1
        %v660 = vsel %vm657, %v658, %v659
        %v661 = vrot.slane %v629, 1
        %v662 = vrot.slane %v609, 1
        %v663 = vsel %vm657, %v661, %v662
        %v664 = vrot.slane %v630, 1
        %v665 = vsel %vm657, %v659, %v664
        %v666 = vrot.slane %v631, 1
        %v667 = vsel %vm657, %v662, %v666
        %v670 = vsel %vm386, %v663, 0
        %v672 = vsel %vm386, %v667, 0
        %674 = vmatprep.subr.mxu0 0.0
        %675 = vmatpush1.msra.mxu0 %v648
        %676 = vmatprep.subr.mxu0 0.0
        %677 = vmatpush1.msra.mxu0 %v647
        %678 = vmatprep.subr.mxu0 0.0
        %679 = vmatpush1.msra.mxu0 %v646
        %680 = vmatprep.subr.mxu0 0.0
        %681 = vmatpush1.msra.mxu0 %v645
        %682 = vmatprep.subr.mxu0 0.0
        %683 = vmatpush1.msra.mxu0 %v644
        %684 = vmatprep.subr.mxu0 0.0
        %685 = vmatpush1.msra.mxu0 %v643
        %686 = vmatprep.subr.mxu0 0.0
        %687 = vmatpush1.msra.mxu0 %v642
        %688 = vmatprep.subr.mxu0 0.0
        %689 = vmatpush1.msra.mxu0 %v641
        %690 = vmatprep.subr.mxu0 0.0
        %691 = vmatpush1.msra.mxu0 %v640
        %692 = vmatprep.subr.mxu0 0.0
        %693 = vmatpush1.msra.mxu0 %v639
        %694 = vmatprep.subr.mxu0 0.0
        %695 = vmatpush1.msra.mxu0 %v638
        %696 = vmatprep.subr.mxu0 0.0
        %697 = vmatpush1.msra.mxu0 %v637
        %698 = vmatprep.subr.mxu0 0.0
        %699 = vmatpush1.msra.mxu0 %v636
        %700 = vmatprep.subr.mxu0 0.0
        %701 = vmatpush1.msra.mxu0 %v635
        %702 = vmatprep.subr.mxu0 0.0
        %703 = vmatpush1.msra.mxu0 %v634
        %704 = vmatprep.subr.mxu0 0.0
        %705 = vmatpush1.msra.mxu0 %v633
        %706 = vmatprep.subr.mxu0 0.0
        %707 = vmatpush2.msra.mxu0 0.0
        %708 = vmatprep.subr.mxu0 0.0
        %709 = vmatpush2.msra.mxu0 0.0
        %710 = vmatprep.subr.mxu0 0.0
        %711 = vmatpush2.msra.mxu0 0.0
        %712 = vmatprep.subr.mxu0 0.0
        %713 = vmatpush2.msra.mxu0 0.0
        %714 = vmatprep.subr.mxu0 0.0
        %715 = vmatpush2.msra.mxu0 0.0
        %716 = vmatprep.subr.mxu0 0.0
        %717 = vmatpush2.msra.mxu0 0.0
        %718 = vmatprep.subr.mxu0 0.0
        %719 = vmatpush2.msra.mxu0 0.0
        %720 = vmatprep.subr.mxu0 0.0
        %721 = vmatpush2.msra.mxu0 0.0
        %722 = vmatprep.subr.mxu0 0.0
        %723 = vmatpush2.msra.mxu0 0.0
        %724 = vmatprep.subr.mxu0 0.0
        %725 = vmatpush2.msra.mxu0 0.0
        %726 = vmatprep.subr.mxu0 0.0
        %727 = vmatpush2.msra.mxu0 0.0
        %728 = vmatprep.subr.mxu0 0.0
        %729 = vmatpush2.msra.mxu0 0.0
        %730 = vmatprep.subr.mxu0 0.0
        %731 = vmatpush2.msra.mxu0 0.0
        %732 = vmatprep.subr.mxu0 0.0
        %733 = vmatpush2.msra.mxu0 0.0
        %734 = vmatprep.subr.mxu0 0.0
        %735 = vmatpush2.msra.mxu0 %v650
        %736 = vmatprep.subr.mxu0 0.0
        %737 = vmatpush2.msra.mxu0 %v649
        %738 = vmatprep.mubr.f32.mxu0 %v670
        %739 = vmatmul.mubr.f32.gmra.mxu0 %v660
        %v740 = vpop.f32.mrf.mxu0
        %v741 = vadd.f32 0.0, %v740
        %v742 = vpop.f32.mrf.mxu0
        %743 = vmatprep.mubr.f32.mxu0 %v672
        %744 = vmatmul.mubr.f32.gmra.mxu0 %v665
        %v745 = vpop.f32.mrf.mxu0
        %v746 = vadd.f32 0.0, %v745
        %v747 = vpop.f32.mrf.mxu0
        %748 = vdwg.mxu0
        %v750 = vsel %vm386, %v607, 0
        %v752 = vsel %vm386, %v609, 0
        %754 = vmatprep.subr.mxu0 0.0
        %755 = vmatpush1.msra.mxu0 %v625
        %756 = vmatprep.subr.mxu0 0.0
        %757 = vmatpush1.msra.mxu0 %v624
        %758 = vmatprep.subr.mxu0 0.0
        %759 = vmatpush1.msra.mxu0 %v623
        %760 = vmatprep.subr.mxu0 0.0
        %761 = vmatpush1.msra.mxu0 %v622
        %762 = vmatprep.subr.mxu0 0.0
        %763 = vmatpush1.msra.mxu0 %v621
        %764 = vmatprep.subr.mxu0 0.0
        %765 = vmatpush1.msra.mxu0 %v620
        %766 = vmatprep.subr.mxu0 0.0
        %767 = vmatpush1.msra.mxu0 %v619
        %768 = vmatprep.subr.mxu0 0.0
        %769 = vmatpush1.msra.mxu0 %v618
        %770 = vmatprep.subr.mxu0 0.0
        %771 = vmatpush1.msra.mxu0 %v617
        %772 = vmatprep.subr.mxu0 0.0
        %773 = vmatpush1.msra.mxu0 %v616
        %774 = vmatprep.subr.mxu0 0.0
        %775 = vmatpush1.msra.mxu0 %v615
        %776 = vmatprep.subr.mxu0 0.0
        %777 = vmatpush1.msra.mxu0 %v614
        %778 = vmatprep.subr.mxu0 0.0
        %779 = vmatpush1.msra.mxu0 %v613
        %780 = vmatprep.subr.mxu0 0.0
        %781 = vmatpush1.msra.mxu0 %v612
        %782 = vmatprep.subr.mxu0 0.0
        %783 = vmatpush1.msra.mxu0 %v611
        %784 = vmatprep.subr.mxu0 0.0
        %785 = vmatpush1.msra.mxu0 %v610
        %786 = vmatprep.subr.mxu0 0.0
        %787 = vmatpush2.msra.mxu0 0.0
        %788 = vmatprep.subr.mxu0 0.0
        %789 = vmatpush2.msra.mxu0 0.0
        %790 = vmatprep.subr.mxu0 0.0
        %791 = vmatpush2.msra.mxu0 0.0
        %792 = vmatprep.subr.mxu0 0.0
        %793 = vmatpush2.msra.mxu0 0.0
        %794 = vmatprep.subr.mxu0 0.0
        %795 = vmatpush2.msra.mxu0 0.0
        %796 = vmatprep.subr.mxu0 0.0
        %797 = vmatpush2.msra.mxu0 0.0
        %798 = vmatprep.subr.mxu0 0.0
        %799 = vmatpush2.msra.mxu0 0.0
        %800 = vmatprep.subr.mxu0 0.0
        %801 = vmatpush2.msra.mxu0 0.0
        %802 = vmatprep.subr.mxu0 0.0
        %803 = vmatpush2.msra.mxu0 0.0
        %804 = vmatprep.subr.mxu0 0.0
        %805 = vmatpush2.msra.mxu0 0.0
        %806 = vmatprep.subr.mxu0 0.0
        %807 = vmatpush2.msra.mxu0 0.0
        %808 = vmatprep.subr.mxu0 0.0
        %809 = vmatpush2.msra.mxu0 0.0
        %810 = vmatprep.subr.mxu0 0.0
        %811 = vmatpush2.msra.mxu0 0.0
        %812 = vmatprep.subr.mxu0 0.0
        %813 = vmatpush2.msra.mxu0 0.0
        %814 = vmatprep.subr.mxu0 0.0
        %815 = vmatpush2.msra.mxu0 %v627
        %816 = vmatprep.subr.mxu0 0.0
        %817 = vmatpush2.msra.mxu0 %v626
        %818 = vmatprep.mubr.f32.mxu0 %v750
        %819 = vmatmul.mubr.f32.gmra.mxu0 %v606
        %v820 = vpop.f32.mrf.mxu0
        %v821 = vadd.f32 %v741, %v820
        %v822 = vpop.f32.mrf.mxu0
        %823 = vmatprep.mubr.f32.mxu0 %v752
        %824 = vmatmul.mubr.f32.gmra.mxu0 %v608
        %v825 = vpop.f32.mrf.mxu0
        %v826 = vadd.f32 %v746, %v825
        %v827 = vpop.f32.mrf.mxu0
        %828 = vdwg.mxu0
        %v829 = vld [vmem:[#allocation2] sm:$0xfc]
        %v830 = vld [vmem:[#allocation2 + $0x8] sm:$0xfc]
        %v831 = vld [vmem:[#allocation2 + $0x20] sm:$0x3]
        %v832 = vld [vmem:[#allocation2 + $0x28] sm:$0x3]
        %s833 = scalar_lea.vmem [#allocation9], 288
        %v834 = vld [vmem:[%s833] sm:$0xff]
        %v835 = vld [vmem:[%s833 + $0x8] sm:$0xff]
        %v836 = vld [vmem:[%s833 + $0x10] sm:$0xff]
        %v837 = vld [vmem:[%s833 + $0x18] sm:$0xff]
        %v838 = vld [vmem:[%s833 + $0x20] sm:$0xff]
        %v839 = vld [vmem:[%s833 + $0x28] sm:$0xff]
        %v840 = vld [vmem:[%s833 + $0x30] sm:$0xff]
        %v841 = vld [vmem:[%s833 + $0x38] sm:$0xff]
        %v842 = vld [vmem:[%s833 + $0x40] sm:$0xff]
        %v843 = vld [vmem:[%s833 + $0x48] sm:$0xff]
        %v844 = vld [vmem:[%s833 + $0x50] sm:$0xff]
        %v845 = vld [vmem:[%s833 + $0x58] sm:$0xff]
        %v846 = vld [vmem:[%s833 + $0x60] sm:$0xff]
        %v847 = vld [vmem:[%s833 + $0x68] sm:$0xff]
        %v848 = vld [vmem:[%s833 + $0x70] sm:$0xff]
        %v849 = vld [vmem:[%s833 + $0x78] sm:$0xff]
        %v850 = vld [vmem:[%s833 + $0x80] sm:$0xff]
        %v851 = vld [vmem:[%s833 + $0x88] sm:$0xff]
        %vm856 = vcmask 1045504
        %v857 = vrot.slane %v829, 2
        %v858 = vrot.slane %v608, 2
        %v859 = vsel %vm856, %v857, %v858
        %v860 = vrot.slane %v830, 2
        %v861 = vrot.slane %v609, 2
        %v862 = vsel %vm856, %v860, %v861
        %v863 = vrot.slane %v831, 2
        %v864 = vsel %vm856, %v858, %v863
        %v865 = vrot.slane %v832, 2
        %v866 = vsel %vm856, %v861, %v865
        %v869 = vsel %vm386, %v862, 0
        %v871 = vsel %vm386, %v866, 0
        %873 = vmatprep.subr.mxu0 0.0
        %874 = vmatpush1.msra.mxu0 %v849
        %875 = vmatprep.subr.mxu0 0.0
        %876 = vmatpush1.msra.mxu0 %v848
        %877 = vmatprep.subr.mxu0 0.0
        %878 = vmatpush1.msra.mxu0 %v847
        %879 = vmatprep.subr.mxu0 0.0
        %880 = vmatpush1.msra.mxu0 %v846
        %881 = vmatprep.subr.mxu0 0.0
        %882 = vmatpush1.msra.mxu0 %v845
        %883 = vmatprep.subr.mxu0 0.0
        %884 = vmatpush1.msra.mxu0 %v844
        %885 = vmatprep.subr.mxu0 0.0
        %886 = vmatpush1.msra.mxu0 %v843
        %887 = vmatprep.subr.mxu0 0.0
        %888 = vmatpush1.msra.mxu0 %v842
        %889 = vmatprep.subr.mxu0 0.0
        %890 = vmatpush1.msra.mxu0 %v841
        %891 = vmatprep.subr.mxu0 0.0
        %892 = vmatpush1.msra.mxu0 %v840
        %893 = vmatprep.subr.mxu0 0.0
        %894 = vmatpush1.msra.mxu0 %v839
        %895 = vmatprep.subr.mxu0 0.0
        %896 = vmatpush1.msra.mxu0 %v838
        %897 = vmatprep.subr.mxu0 0.0
        %898 = vmatpush1.msra.mxu0 %v837
        %899 = vmatprep.subr.mxu0 0.0
        %900 = vmatpush1.msra.mxu0 %v836
        %901 = vmatprep.subr.mxu0 0.0
        %902 = vmatpush1.msra.mxu0 %v835
        %903 = vmatprep.subr.mxu0 0.0
        %904 = vmatpush1.msra.mxu0 %v834
        %905 = vmatprep.subr.mxu0 0.0
        %906 = vmatpush2.msra.mxu0 0.0
        %907 = vmatprep.subr.mxu0 0.0
        %908 = vmatpush2.msra.mxu0 0.0
        %909 = vmatprep.subr.mxu0 0.0
        %910 = vmatpush2.msra.mxu0 0.0
        %911 = vmatprep.subr.mxu0 0.0
        %912 = vmatpush2.msra.mxu0 0.0
        %913 = vmatprep.subr.mxu0 0.0
        %914 = vmatpush2.msra.mxu0 0.0
        %915 = vmatprep.subr.mxu0 0.0
        %916 = vmatpush2.msra.mxu0 0.0
        %917 = vmatprep.subr.mxu0 0.0
        %918 = vmatpush2.msra.mxu0 0.0
        %919 = vmatprep.subr.mxu0 0.0
        %920 = vmatpush2.msra.mxu0 0.0
        %921 = vmatprep.subr.mxu0 0.0
        %922 = vmatpush2.msra.mxu0 0.0
        %923 = vmatprep.subr.mxu0 0.0
        %924 = vmatpush2.msra.mxu0 0.0
        %925 = vmatprep.subr.mxu0 0.0
        %926 = vmatpush2.msra.mxu0 0.0
        %927 = vmatprep.subr.mxu0 0.0
        %928 = vmatpush2.msra.mxu0 0.0
        %929 = vmatprep.subr.mxu0 0.0
        %930 = vmatpush2.msra.mxu0 0.0
        %931 = vmatprep.subr.mxu0 0.0
        %932 = vmatpush2.msra.mxu0 0.0
        %933 = vmatprep.subr.mxu0 0.0
        %934 = vmatpush2.msra.mxu0 %v851
        %935 = vmatprep.subr.mxu0 0.0
        %936 = vmatpush2.msra.mxu0 %v850
        %937 = vmatprep.mubr.f32.mxu0 %v869
        %938 = vmatmul.mubr.f32.gmra.mxu0 %v859
        %v939 = vpop.f32.mrf.mxu0
        %v940 = vadd.f32 0.0, %v939
        %v941 = vpop.f32.mrf.mxu0
        %942 = vmatprep.mubr.f32.mxu0 %v871
        %943 = vmatmul.mubr.f32.gmra.mxu0 %v864
        %v944 = vpop.f32.mrf.mxu0
        %v945 = vadd.f32 0.0, %v944
        %v946 = vpop.f32.mrf.mxu0
        %947 = vdwg.mxu0
        %v948 = vadd.f32 %v821, %v940
        %v949 = vadd.f32 %v826, %v945
        %v950 = vld [vmem:[%s5] sm:$0x1]
        %v952 = vlaneseq
        %v953 = vshrl.u32 %v952, 7
        %v954 = vsub.s32 0, %v953
        %v955 = vrot.slane %v950, %v954
        %v957 = vadd.f32 %v948, %v955
        %v958 = vadd.f32 %v949, %v955
        %v959 = vmax.f32 %v957, 0.0
        %v960 = vmax.f32 %v958, 0.0
        %961 = vst.msk [vmem:[#allocation3] sm:$0x1] %vm408, 0.0
        %962 = vst.msk [vmem:[#allocation3 + $0x11] sm:$0x1] %vm408, 0.0
        %963 = vst.msk [vmem:[#allocation3 + $0x1] sm:$0xff] %vm406, %v959
        %964 = vst.msk [vmem:[#allocation3 + $0x9] sm:$0xff] %vm406, %v960
        %v965 = vld [vmem:[#allocation3] sm:$0xff]
        %v966 = vld [vmem:[#allocation3 + $0x8] sm:$0xff]
        %v967 = vld [vmem:[#allocation10] sm:$0xff]
        %v968 = vld [vmem:[#allocation10 + $0x8] sm:$0xff]
        %v969 = vld [vmem:[#allocation10 + $0x10] sm:$0xff]
        %v970 = vld [vmem:[#allocation10 + $0x18] sm:$0xff]
        %v971 = vld [vmem:[#allocation10 + $0x20] sm:$0xff]
        %v972 = vld [vmem:[#allocation10 + $0x28] sm:$0xff]
        %v973 = vld [vmem:[#allocation10 + $0x30] sm:$0xff]
        %v974 = vld [vmem:[#allocation10 + $0x38] sm:$0xff]
        %v975 = vld [vmem:[#allocation10 + $0x40] sm:$0xff]
        %v976 = vld [vmem:[#allocation3 + $0x1] sm:$0xff]
        %v977 = vld [vmem:[#allocation3 + $0x9] sm:$0xff]
        %s978 = scalar_lea.vmem [#allocation10], 72
        %v979 = vld [vmem:[%s978] sm:$0xff]
        %v980 = vld [vmem:[%s978 + $0x8] sm:$0xff]
        %v981 = vld [vmem:[%s978 + $0x10] sm:$0xff]
        %v982 = vld [vmem:[%s978 + $0x18] sm:$0xff]
        %v983 = vld [vmem:[%s978 + $0x20] sm:$0xff]
        %v984 = vld [vmem:[%s978 + $0x28] sm:$0xff]
        %v985 = vld [vmem:[%s978 + $0x30] sm:$0xff]
        %v986 = vld [vmem:[%s978 + $0x38] sm:$0xff]
        %v987 = vld [vmem:[%s978 + $0x40] sm:$0xff]
        %v989 = vsel %vm406, %v976, 0
        %v992 = vsel %vm406, %v977, 0
        %994 = vmatprep.subr.mxu0 0.0
        %995 = vmatpush1.msra.mxu0 0.0
        %996 = vmatprep.subr.mxu0 0.0
        %997 = vmatpush1.msra.mxu0 0.0
        %998 = vmatprep.subr.mxu0 0.0
        %999 = vmatpush1.msra.mxu0 0.0
        %1000 = vmatprep.subr.mxu0 0.0
        %1001 = vmatpush1.msra.mxu0 0.0
        %1002 = vmatprep.subr.mxu0 0.0
        %1003 = vmatpush1.msra.mxu0 0.0
        %1004 = vmatprep.subr.mxu0 0.0
        %1005 = vmatpush1.msra.mxu0 0.0
        %1006 = vmatprep.subr.mxu0 0.0
        %1007 = vmatpush1.msra.mxu0 0.0
        %1008 = vmatprep.subr.mxu0 0.0
        %1009 = vmatpush1.msra.mxu0 %v987
        %1010 = vmatprep.subr.mxu0 0.0
        %1011 = vmatpush1.msra.mxu0 %v986
        %1012 = vmatprep.subr.mxu0 0.0
        %1013 = vmatpush1.msra.mxu0 %v985
        %1014 = vmatprep.subr.mxu0 0.0
        %1015 = vmatpush1.msra.mxu0 %v984
        %1016 = vmatprep.subr.mxu0 0.0
        %1017 = vmatpush1.msra.mxu0 %v983
        %1018 = vmatprep.subr.mxu0 0.0
        %1019 = vmatpush1.msra.mxu0 %v982
        %1020 = vmatprep.subr.mxu0 0.0
        %1021 = vmatpush1.msra.mxu0 %v981
        %1022 = vmatprep.subr.mxu0 0.0
        %1023 = vmatpush1.msra.mxu0 %v980
        %1024 = vmatprep.subr.mxu0 0.0
        %1025 = vmatpush1.msra.mxu0 %v979
        %1026 = vmatprep.subr.mxu0 0.0
        %1027 = vmatpush2.msra.mxu0 0.0
        %1028 = vmatprep.subr.mxu0 0.0
        %1029 = vmatpush2.msra.mxu0 0.0
        %1030 = vmatprep.subr.mxu0 0.0
        %1031 = vmatpush2.msra.mxu0 0.0
        %1032 = vmatprep.subr.mxu0 0.0
        %1033 = vmatpush2.msra.mxu0 0.0
        %1034 = vmatprep.subr.mxu0 0.0
        %1035 = vmatpush2.msra.mxu0 0.0
        %1036 = vmatprep.subr.mxu0 0.0
        %1037 = vmatpush2.msra.mxu0 0.0
        %1038 = vmatprep.subr.mxu0 0.0
        %1039 = vmatpush2.msra.mxu0 0.0
        %1040 = vmatprep.subr.mxu0 0.0
        %1041 = vmatpush2.msra.mxu0 0.0
        %1042 = vmatprep.subr.mxu0 0.0
        %1043 = vmatpush2.msra.mxu0 0.0
        %1044 = vmatprep.subr.mxu0 0.0
        %1045 = vmatpush2.msra.mxu0 0.0
        %1046 = vmatprep.subr.mxu0 0.0
        %1047 = vmatpush2.msra.mxu0 0.0
        %1048 = vmatprep.subr.mxu0 0.0
        %1049 = vmatpush2.msra.mxu0 0.0
        %1050 = vmatprep.subr.mxu0 0.0
        %1051 = vmatpush2.msra.mxu0 0.0
        %1052 = vmatprep.subr.mxu0 0.0
        %1053 = vmatpush2.msra.mxu0 0.0
        %1054 = vmatprep.subr.mxu0 0.0
        %1055 = vmatpush2.msra.mxu0 0.0
        %1056 = vmatprep.subr.mxu0 0.0
        %1057 = vmatpush2.msra.mxu0 0.0
        %1058 = vmatprep.mubr.f32.mxu0 0.0
        %1059 = vmatmul.mubr.f32.gmra.mxu0 %v989
        %v1060 = vpop.f32.mrf.mxu0
        %v1061 = vadd.f32 0.0, %v1060
        %v1062 = vpop.f32.mrf.mxu0
        %1063 = vmatprep.mubr.f32.mxu0 0.0
        %1064 = vmatmul.mubr.f32.gmra.mxu0 %v992
        %v1065 = vpop.f32.mrf.mxu0
        %v1066 = vadd.f32 0.0, %v1065
        %v1067 = vpop.f32.mrf.mxu0
        %1068 = vdwg.mxu0
        %v1070 = vsel %vm406, %v965, 0
        %v1073 = vsel %vm406, %v966, 0
        %1075 = vmatprep.subr.mxu0 0.0
        %1076 = vmatpush1.msra.mxu0 0.0
        %1077 = vmatprep.subr.mxu0 0.0
        %1078 = vmatpush1.msra.mxu0 0.0
        %1079 = vmatprep.subr.mxu0 0.0
        %1080 = vmatpush1.msra.mxu0 0.0
        %1081 = vmatprep.subr.mxu0 0.0
        %1082 = vmatpush1.msra.mxu0 0.0
        %1083 = vmatprep.subr.mxu0 0.0
        %1084 = vmatpush1.msra.mxu0 0.0
        %1085 = vmatprep.subr.mxu0 0.0
        %1086 = vmatpush1.msra.mxu0 0.0
        %1087 = vmatprep.subr.mxu0 0.0
        %1088 = vmatpush1.msra.mxu0 0.0
        %1089 = vmatprep.subr.mxu0 0.0
        %1090 = vmatpush1.msra.mxu0 %v975
        %1091 = vmatprep.subr.mxu0 0.0
        %1092 = vmatpush1.msra.mxu0 %v974
        %1093 = vmatprep.subr.mxu0 0.0
        %1094 = vmatpush1.msra.mxu0 %v973
        %1095 = vmatprep.subr.mxu0 0.0
        %1096 = vmatpush1.msra.mxu0 %v972
        %1097 = vmatprep.subr.mxu0 0.0
        %1098 = vmatpush1.msra.mxu0 %v971
        %1099 = vmatprep.subr.mxu0 0.0
        %1100 = vmatpush1.msra.mxu0 %v970
        %1101 = vmatprep.subr.mxu0 0.0
        %1102 = vmatpush1.msra.mxu0 %v969
        %1103 = vmatprep.subr.mxu0 0.0
        %1104 = vmatpush1.msra.mxu0 %v968
        %1105 = vmatprep.subr.mxu0 0.0
        %1106 = vmatpush1.msra.mxu0 %v967
        %1107 = vmatprep.subr.mxu0 0.0
        %1108 = vmatpush2.msra.mxu0 0.0
        %1109 = vmatprep.subr.mxu0 0.0
        %1110 = vmatpush2.msra.mxu0 0.0
        %1111 = vmatprep.subr.mxu0 0.0
        %1112 = vmatpush2.msra.mxu0 0.0
        %1113 = vmatprep.subr.mxu0 0.0
        %1114 = vmatpush2.msra.mxu0 0.0
        %1115 = vmatprep.subr.mxu0 0.0
        %1116 = vmatpush2.msra.mxu0 0.0
        %1117 = vmatprep.subr.mxu0 0.0
        %1118 = vmatpush2.msra.mxu0 0.0
        %1119 = vmatprep.subr.mxu0 0.0
        %1120 = vmatpush2.msra.mxu0 0.0
        %1121 = vmatprep.subr.mxu0 0.0
        %1122 = vmatpush2.msra.mxu0 0.0
        %1123 = vmatprep.subr.mxu0 0.0
        %1124 = vmatpush2.msra.mxu0 0.0
        %1125 = vmatprep.subr.mxu0 0.0
        %1126 = vmatpush2.msra.mxu0 0.0
        %1127 = vmatprep.subr.mxu0 0.0
        %1128 = vmatpush2.msra.mxu0 0.0
        %1129 = vmatprep.subr.mxu0 0.0
        %1130 = vmatpush2.msra.mxu0 0.0
        %1131 = vmatprep.subr.mxu0 0.0
        %1132 = vmatpush2.msra.mxu0 0.0
        %1133 = vmatprep.subr.mxu0 0.0
        %1134 = vmatpush2.msra.mxu0 0.0
        %1135 = vmatprep.subr.mxu0 0.0
        %1136 = vmatpush2.msra.mxu0 0.0
        %1137 = vmatprep.subr.mxu0 0.0
        %1138 = vmatpush2.msra.mxu0 0.0
        %1139 = vmatprep.mubr.f32.mxu0 0.0
        %1140 = vmatmul.mubr.f32.gmra.mxu0 %v1070
        %v1141 = vpop.f32.mrf.mxu0
        %v1142 = vadd.f32 %v1061, %v1141
        %v1143 = vpop.f32.mrf.mxu0
        %1144 = vmatprep.mubr.f32.mxu0 0.0
        %1145 = vmatmul.mubr.f32.gmra.mxu0 %v1073
        %v1146 = vpop.f32.mrf.mxu0
        %v1147 = vadd.f32 %v1066, %v1146
        %v1148 = vpop.f32.mrf.mxu0
        %1149 = vdwg.mxu0
        %v1150 = vld [vmem:[#allocation3 + $0x2] sm:$0xff]
        %v1151 = vld [vmem:[#allocation3 + $0xa] sm:$0xff]
        %s1152 = scalar_lea.vmem [#allocation10], 144
        %v1153 = vld [vmem:[%s1152] sm:$0xff]
        %v1154 = vld [vmem:[%s1152 + $0x8] sm:$0xff]
        %v1155 = vld [vmem:[%s1152 + $0x10] sm:$0xff]
        %v1156 = vld [vmem:[%s1152 + $0x18] sm:$0xff]
        %v1157 = vld [vmem:[%s1152 + $0x20] sm:$0xff]
        %v1158 = vld [vmem:[%s1152 + $0x28] sm:$0xff]
        %v1159 = vld [vmem:[%s1152 + $0x30] sm:$0xff]
        %v1160 = vld [vmem:[%s1152 + $0x38] sm:$0xff]
        %v1161 = vld [vmem:[%s1152 + $0x40] sm:$0xff]
        %v1163 = vsel %vm406, %v1150, 0
        %v1166 = vsel %vm406, %v1151, 0
        %1168 = vmatprep.subr.mxu0 0.0
        %1169 = vmatpush1.msra.mxu0 0.0
        %1170 = vmatprep.subr.mxu0 0.0
        %1171 = vmatpush1.msra.mxu0 0.0
        %1172 = vmatprep.subr.mxu0 0.0
        %1173 = vmatpush1.msra.mxu0 0.0
        %1174 = vmatprep.subr.mxu0 0.0
        %1175 = vmatpush1.msra.mxu0 0.0
        %1176 = vmatprep.subr.mxu0 0.0
        %1177 = vmatpush1.msra.mxu0 0.0
        %1178 = vmatprep.subr.mxu0 0.0
        %1179 = vmatpush1.msra.mxu0 0.0
        %1180 = vmatprep.subr.mxu0 0.0
        %1181 = vmatpush1.msra.mxu0 0.0
        %1182 = vmatprep.subr.mxu0 0.0
        %1183 = vmatpush1.msra.mxu0 %v1161
        %1184 = vmatprep.subr.mxu0 0.0
        %1185 = vmatpush1.msra.mxu0 %v1160
        %1186 = vmatprep.subr.mxu0 0.0
        %1187 = vmatpush1.msra.mxu0 %v1159
        %1188 = vmatprep.subr.mxu0 0.0
        %1189 = vmatpush1.msra.mxu0 %v1158
        %1190 = vmatprep.subr.mxu0 0.0
        %1191 = vmatpush1.msra.mxu0 %v1157
        %1192 = vmatprep.subr.mxu0 0.0
        %1193 = vmatpush1.msra.mxu0 %v1156
        %1194 = vmatprep.subr.mxu0 0.0
        %1195 = vmatpush1.msra.mxu0 %v1155
        %1196 = vmatprep.subr.mxu0 0.0
        %1197 = vmatpush1.msra.mxu0 %v1154
        %1198 = vmatprep.subr.mxu0 0.0
        %1199 = vmatpush1.msra.mxu0 %v1153
        %1200 = vmatprep.subr.mxu0 0.0
        %1201 = vmatpush2.msra.mxu0 0.0
        %1202 = vmatprep.subr.mxu0 0.0
        %1203 = vmatpush2.msra.mxu0 0.0
        %1204 = vmatprep.subr.mxu0 0.0
        %1205 = vmatpush2.msra.mxu0 0.0
        %1206 = vmatprep.subr.mxu0 0.0
        %1207 = vmatpush2.msra.mxu0 0.0
        %1208 = vmatprep.subr.mxu0 0.0
        %1209 = vmatpush2.msra.mxu0 0.0
        %1210 = vmatprep.subr.mxu0 0.0
        %1211 = vmatpush2.msra.mxu0 0.0
        %1212 = vmatprep.subr.mxu0 0.0
        %1213 = vmatpush2.msra.mxu0 0.0
        %1214 = vmatprep.subr.mxu0 0.0
        %1215 = vmatpush2.msra.mxu0 0.0
        %1216 = vmatprep.subr.mxu0 0.0
        %1217 = vmatpush2.msra.mxu0 0.0
        %1218 = vmatprep.subr.mxu0 0.0
        %1219 = vmatpush2.msra.mxu0 0.0
        %1220 = vmatprep.subr.mxu0 0.0
        %1221 = vmatpush2.msra.mxu0 0.0
        %1222 = vmatprep.subr.mxu0 0.0
        %1223 = vmatpush2.msra.mxu0 0.0
        %1224 = vmatprep.subr.mxu0 0.0
        %1225 = vmatpush2.msra.mxu0 0.0
        %1226 = vmatprep.subr.mxu0 0.0
        %1227 = vmatpush2.msra.mxu0 0.0
        %1228 = vmatprep.subr.mxu0 0.0
        %1229 = vmatpush2.msra.mxu0 0.0
        %1230 = vmatprep.subr.mxu0 0.0
        %1231 = vmatpush2.msra.mxu0 0.0
        %1232 = vmatprep.mubr.f32.mxu0 0.0
        %1233 = vmatmul.mubr.f32.gmra.mxu0 %v1163
        %v1234 = vpop.f32.mrf.mxu0
        %v1235 = vadd.f32 0.0, %v1234
        %v1236 = vpop.f32.mrf.mxu0
        %1237 = vmatprep.mubr.f32.mxu0 0.0
        %1238 = vmatmul.mubr.f32.gmra.mxu0 %v1166
        %v1239 = vpop.f32.mrf.mxu0
        %v1240 = vadd.f32 0.0, %v1239
        %v1241 = vpop.f32.mrf.mxu0
        %1242 = vdwg.mxu0
        %v1243 = vadd.f32 %v1142, %v1235
        %v1244 = vadd.f32 %v1147, %v1240
        %v1245 = vld [vmem:[%s7] sm:$0x1]
        %v1247 = vlaneseq
        %v1248 = vshrl.u32 %v1247, 7
        %v1249 = vsub.s32 0, %v1248
        %v1250 = vrot.slane %v1245, %v1249
        %v1252 = vadd.f32 %v1243, %v1250
        %v1253 = vadd.f32 %v1244, %v1250
        %v1254 = vmax.f32 %v1252, 0.0
        %v1255 = vmax.f32 %v1253, 0.0
        %1256 = vst [vmem:[%s380] sm:$0xff] %v1254
        %1257 = vst [vmem:[%s380 + $0x8] sm:$0xff] %v1255
        %s1258 = sand.u32 %s213, 1
        %s1259 = scalar_lea.sflag [#allocation6], %s1258
        %s1260 = sand.u32 %s213, 1
        %s1261 = smul.addr %s1260, 16
        %s1262 = scalar_lea.vmem [#allocation12], %s1261
        // Predicated region
        $region69: #{tpu_custom_call.1} parent=51 // pred_check
          %p1263 = pneg %p223
        $region70: #{tpu_custom_call.1} parent=51 // pred_check_branch
          %1265 = sbr.rel (%p1263) target = $region72
        $region71: #{tpu_custom_call.1} parent=51 // pred_region
          %s1267 = ssub.s32 256, 256
          %1268 = vsyncadd %s1259, %s1267
          %s1269 = smul.addr %s27, 2
          %s1270 = smul.addr %s1269, 128
          %s1271 = scalar_lea.hbm %s8, %s1270
          %s1272 = sshll.u32 %s1262, 4
          %s1273 = int_to_ptr.vmem [resolvable:$true] %s1272
          %1278 = dma.vmem_to_hbm [thread:$0]  %s1273, 256, %s1271, %s1259, 128, 128, 8
        $region72: #{tpu_custom_call.1} parent=51 // pred_fallthru
          _
      $region52: #{tpu_custom_call.1} parent=5 // pred_fallthru
        _
      %p1279 = scmp.le.s32.totalorder 2, %s22
      // Predicated region
      $region73: #{tpu_custom_call.1} parent=5 // pred_check
        %p1280 = pneg %p1279
      $region74: #{tpu_custom_call.1} parent=5 // pred_check_branch
        %1282 = sbr.rel (%p1280) target = $region76
      $region75: #{tpu_custom_call.1} parent=5 // pred_region
        %s1283 = ssub.s32 %s22, 2
        // Predicated region
        $region77: #{tpu_custom_call.1} parent=75 // pred_check
          %p1284 = pneg %p229
        $region78: #{tpu_custom_call.1} parent=75 // pred_check_branch
          %1286 = sbr.rel (%p1284) target = $region80
        $region79: #{tpu_custom_call.1} parent=75 // pred_region
          %s1287 = sand.u32 %s214, 1
          %s1288 = scalar_lea.sflag [#allocation6], %s1287
          %s1289 = sand.u32 %s214, 1
          %s1290 = smul.addr %s1289, 16
          %s1291 = scalar_lea.vmem [#allocation12], %s1290
          %1292 = dma.done %s1288, 256
        $region80: #{tpu_custom_call.1} parent=75 // pred_fallthru
          _
      $region76: #{tpu_custom_call.1} parent=5 // pred_fallthru
        _
    $region6: #{tpu_custom_call.1} parent=1 // loop_footer
      %s26 = sadd.s32 1, %s22
    $region7: #{tpu_custom_call.1} parent=1 // loop_footer_branch
      %21 = sbr.rel target = $region3
    $region8: #{tpu_custom_call.1} parent=1 // loop_exit
      _
    %1293 = vsyncpa [#allocation5], 1
    %s1294 = scalar_lea.sflag [#allocation5], 1
    %1295 = vsyncpa %s1294, 1
    %1296 = vsyncpa [#allocation8], 1
    %1297 = vsyncpa [#allocation11], 1
    %1298 = vsyncpa [#allocation6], 1
    %s1299 = scalar_lea.sflag [#allocation6], 1
    %1300 = vsyncpa %s1299, 1

</llo_original>
